<compile_context>
chip_gen: v6e
topology: v6e:2x2x1
jax: 0.10.0
libtpu: 0.0.40
codegen_flags: <defaults>
</compile_context>

<pallas_src>
import math

import jax
import jax.numpy as jnp
from jax.experimental import pallas as pl
from jax.experimental.pallas import tpu as pltpu

_EXP_NEG10 = math.exp(-10.0)


def _sr_kernel(aff_ref, x_ref,
               fr_h_ref, fi_h_ref, fr_w_ref, fi_w_ref,
               ifr_h_ref, ifi_h_ref, ifr_w_ref, ifi_w_ref,
               bavg_h_ref, bavg_w_ref, bg_h_ref, bg_w_ref,
               out_ref):
    f32 = jnp.float32

    def mm(a, b):
        return jnp.dot(a, b, preferred_element_type=f32)

    x = x_ref[0]                                          # (H, W) f32

    # ---- forward 2-D DFT (x real): X = F_H @ x @ F_W  (F symmetric) ----
    ar = mm(fr_h_ref[...], x)
    ai = mm(fi_h_ref[...], x)
    rr = mm(ar, fr_w_ref[...]) - mm(ai, fi_w_ref[...])
    ri = mm(ar, fi_w_ref[...]) + mm(ai, fr_w_ref[...])

    # ---- spectral residual on the log-amplitude ----
    mag = jnp.sqrt(rr * rr + ri * ri)                     # |X|
    log_amp = jnp.log(mag + _EXP_NEG10)
    amp_filter = mm(mm(bavg_h_ref[...], log_amp), bavg_w_ref[...])
    amp_sr = log_amp - amp_filter

    # exp(amp_sr + i*phase)  with  cos(phase) = rr/|X|, sin(phase) = ri/|X|
    scale = jnp.exp(amp_sr) / jnp.maximum(mag, f32(1e-30))
    zr = scale * rr
    zi = scale * ri

    # ---- inverse 2-D DFT (complex input), then magnitude ----
    br = mm(ifr_h_ref[...], zr) - mm(ifi_h_ref[...], zi)
    bi = mm(ifr_h_ref[...], zi) + mm(ifi_h_ref[...], zr)
    sr_r = mm(br, ifr_w_ref[...]) - mm(bi, ifi_w_ref[...])
    sr_i = mm(br, ifi_w_ref[...]) + mm(bi, ifr_w_ref[...])
    sr = jnp.sqrt(sr_r * sr_r + sr_i * sr_i)

    # ---- 3x3 gaussian blur (separable, zero padded) ----
    sr = mm(mm(bg_h_ref[...], sr), bg_w_ref[...])

    # ---- Conv1x1([SR, x]) + BatchNorm(eval) + ReLU, folded affine ----
    for c in range(3):                                    # 3 output channels
        y = aff_ref[c, 0] * sr + aff_ref[c, 1] * x + aff_ref[c, 2]
        out_ref[0, c] = jnp.maximum(y, 0.0)


def _dft_mats(n):
    k = jnp.arange(n, dtype=jnp.float32)
    ang = (-2.0 * jnp.pi / n) * jnp.outer(k, k)
    return jnp.cos(ang), jnp.sin(ang)


def _idft_mats(n):
    k = jnp.arange(n, dtype=jnp.float32)
    ang = (2.0 * jnp.pi / n) * jnp.outer(k, k)
    return jnp.cos(ang) / n, jnp.sin(ang) / n


def _band(n, taps):
    # Banded matrix implementing a zero-padded 1-D 3-tap convolution
    # (taps must be symmetric, which holds for the mean and gaussian kernels).
    return (taps[0] * jnp.eye(n, k=-1) + taps[1] * jnp.eye(n, k=0)
            + taps[2] * jnp.eye(n, k=1)).astype(jnp.float32)


def sr_layer(x, conv_w, conv_b, bn_gamma, bn_beta, bn_mean, bn_var,
             bn_eps=1e-5):
    """SRlayer_ forward.

    x:       (B, C, H, W)  -- only channel 0 is used (as in the PyTorch module)
    conv_w:  (3, 2)        -- output_conv (1x1) weight, spatial dims squeezed
    conv_b:  (3,)          -- output_conv bias
    bn_*:    (3,)          -- BatchNorm2d(3) eval-mode parameters
    returns: (B, 3, H, W) float32
    """
    B, _, H, W = x.shape
    x1 = x[:, 0, :, :].astype(jnp.float32)                # (B, H, W), no transpose

    fr_h, fi_h = _dft_mats(H)
    fr_w, fi_w = _dft_mats(W)
    ifr_h, ifi_h = _idft_mats(H)
    ifr_w, ifi_w = _idft_mats(W)

    bavg_h = _band(H, (1.0 / 3.0, 1.0 / 3.0, 1.0 / 3.0))
    bavg_w = _band(W, (1.0 / 3.0, 1.0 / 3.0, 1.0 / 3.0))
    bg_h = _band(H, (0.25, 0.5, 0.25))
    bg_w = _band(W, (0.25, 0.5, 0.25))

    # Fold Conv1x1 + eval-mode BatchNorm into a per-channel affine.
    inv_std = bn_gamma / jnp.sqrt(bn_var + bn_eps)
    a = inv_std * conv_w[:, 0]
    b = inv_std * conv_w[:, 1]
    c = inv_std * (conv_b - bn_mean) + bn_beta
    affine = jnp.stack([a, b, c], axis=1).astype(jnp.float32)   # (3, 3)

    full2 = lambda bidx: (0, 0)

    out = pl.pallas_call(
        _sr_kernel,
        out_shape=jax.ShapeDtypeStruct((B, 3, H, W), jnp.float32),
        grid_spec=pltpu.PrefetchScalarGridSpec(
            num_scalar_prefetch=0,
            grid=(B,),
            in_specs=[
                pl.BlockSpec(memory_space=pltpu.MemorySpace.SMEM),   # affine
                pl.BlockSpec((1, H, W), lambda bidx: (bidx, 0, 0)),  # x1
                pl.BlockSpec((H, H), full2),                         # fr_h
                pl.BlockSpec((H, H), full2),                         # fi_h
                pl.BlockSpec((W, W), full2),                         # fr_w
                pl.BlockSpec((W, W), full2),                         # fi_w
                pl.BlockSpec((H, H), full2),                         # ifr_h
                pl.BlockSpec((H, H), full2),                         # ifi_h
                pl.BlockSpec((W, W), full2),                         # ifr_w
                pl.BlockSpec((W, W), full2),                         # ifi_w
                pl.BlockSpec((H, H), full2),                         # bavg_h
                pl.BlockSpec((W, W), full2),                         # bavg_w
                pl.BlockSpec((H, H), full2),                         # bg_h
                pl.BlockSpec((W, W), full2),                         # bg_w
            ],
            out_specs=pl.BlockSpec((1, 3, H, W), lambda bidx: (bidx, 0, 0, 0)),
        ),
        compiler_params=pltpu.CompilerParams(
            dimension_semantics=("parallel",)),
    )(affine, x1, fr_h, fi_h, fr_w, fi_w, ifr_h, ifi_h, ifr_w, ifi_w,
      bavg_h, bavg_w, bg_h, bg_w)
    return out


def _reference(x, conv_w, conv_b, gamma, beta, rmean, rvar, eps=1e-5):
    """Pure-JAX reference (uses XLA's FFT), matching the PyTorch forward."""
    x1 = x[:, 0, :, :].astype(jnp.float32)                # (B, H, W)
    X = jnp.fft.fftn(x1, axes=(-2, -1))
    amp = jnp.abs(X) + _EXP_NEG10
    log_amp = jnp.log(amp)
    phase = jnp.angle(X)

    def conv3(img, kern):
        return jax.lax.conv_general_dilated(
            img[:, None].astype(jnp.float32),
            kern[None, None].astype(jnp.float32),
            window_strides=(1, 1), padding="SAME",
            dimension_numbers=("NCHW", "OIHW", "NCHW"))[:, 0]

    avg_k = jnp.full((3, 3), 1.0 / 9.0, jnp.float32)
    gau_k = jnp.array([[1 / 16, 1 / 8, 1 / 16],
                       [1 / 8, 1 / 4, 1 / 8],
                       [1 / 16, 1 / 8, 1 / 16]], jnp.float32)

    amp_sr = log_amp - conv3(log_amp, avg_k)
    SR = jnp.abs(jnp.fft.ifftn(jnp.exp(amp_sr + 1j * phase), axes=(-2, -1)))
    SR = conv3(SR, gau_k)

    y = (conv_w[None, :, 0, None, None] * SR[:, None]
         + conv_w[None, :, 1, None, None] * x1[:, None]
         + conv_b[None, :, None, None])
    y = (y - rmean[None, :, None, None]) / jnp.sqrt(rvar[None, :, None, None] + eps)
    y = y * gamma[None, :, None, None] + beta[None, :, None, None]
    return jnp.maximum(y, 0.0)


if __name__ == "__main__":
    key = jax.random.PRNGKey(0)
    kx, kw, kb = jax.random.split(key, 3)

    B, C, H, W = 2, 4, 32, 32
    x = jax.random.normal(kx, (B, C, H, W), dtype=jnp.float32)

    # output_conv = Conv2d(2, 3, kernel_size=1): kaiming-normal-ish weights.
    conv_w = jax.random.normal(kw, (3, 2), dtype=jnp.float32) * math.sqrt(2.0 / 3.0)
    conv_b = jax.random.normal(kb, (3,), dtype=jnp.float32) * 0.1
    # BatchNorm2d(3), eval mode with default running stats / affine params.
    gamma = jnp.ones((3,), jnp.float32)
    beta = jnp.zeros((3,), jnp.float32)
    rmean = jnp.zeros((3,), jnp.float32)
    rvar = jnp.ones((3,), jnp.float32)

    y = sr_layer(x, conv_w, conv_b, gamma, beta, rmean, rvar)
    jax.block_until_ready(y)

    y_ref = _reference(x, conv_w, conv_b, gamma, beta, rmean, rvar)
    assert y.shape == (B, 3, H, W)
    # Moderate tolerance: the kernel computes the FFT as MXU matmuls at the
    # MXU's default f32 matmul precision, the reference uses XLA's FFT.
    max_diff = float(jnp.max(jnp.abs(y - y_ref)))
    assert jnp.allclose(y, y_ref, atol=3e-2, rtol=3e-2), max_diff

    print("KERNEL_OK")
</pallas_src>

<mosaic_0001>
module attributes {stable_mosaic.version = 11 : i64} {
  func.func @_sr_kernel(%arg0: i32, %arg1: memref<3x3xf32, #tpu.memory_space<smem>>, %arg2: memref<1x32x32xf32, #tpu.memory_space<vmem>>, %arg3: memref<32x32xf32, #tpu.memory_space<vmem>>, %arg4: memref<32x32xf32, #tpu.memory_space<vmem>>, %arg5: memref<32x32xf32, #tpu.memory_space<vmem>>, %arg6: memref<32x32xf32, #tpu.memory_space<vmem>>, %arg7: memref<32x32xf32, #tpu.memory_space<vmem>>, %arg8: memref<32x32xf32, #tpu.memory_space<vmem>>, %arg9: memref<32x32xf32, #tpu.memory_space<vmem>>, %arg10: memref<32x32xf32, #tpu.memory_space<vmem>>, %arg11: memref<32x32xf32, #tpu.memory_space<vmem>>, %arg12: memref<32x32xf32, #tpu.memory_space<vmem>>, %arg13: memref<32x32xf32, #tpu.memory_space<vmem>>, %arg14: memref<32x32xf32, #tpu.memory_space<vmem>>, %arg15: memref<1x3x32x32xf32, #tpu.memory_space<vmem>>) attributes {dimension_semantics = [#tpu.dimension_semantics<parallel>], iteration_bounds = array<i64: 2>, scalar_prefetch = 0 : i64, scratch_operands = 0 : i64, tpu.core_type = #tpu.core_type<tc>, window_params = [{transform_indices = @transform_0, window_bounds = array<i64: 3, 3>}, {transform_indices = @transform_1, window_bounds = array<i64: 1, 32, 32>}, {pipeline_mode = #tpu.pipeline_mode<synchronous>, transform_indices = @transform_2, window_bounds = array<i64: 32, 32>}, {pipeline_mode = #tpu.pipeline_mode<synchronous>, transform_indices = @transform_3, window_bounds = array<i64: 32, 32>}, {pipeline_mode = #tpu.pipeline_mode<synchronous>, transform_indices = @transform_4, window_bounds = array<i64: 32, 32>}, {pipeline_mode = #tpu.pipeline_mode<synchronous>, transform_indices = @transform_5, window_bounds = array<i64: 32, 32>}, {pipeline_mode = #tpu.pipeline_mode<synchronous>, transform_indices = @transform_6, window_bounds = array<i64: 32, 32>}, {pipeline_mode = #tpu.pipeline_mode<synchronous>, transform_indices = @transform_7, window_bounds = array<i64: 32, 32>}, {pipeline_mode = #tpu.pipeline_mode<synchronous>, transform_indices = @transform_8, window_bounds = array<i64: 32, 32>}, {pipeline_mode = #tpu.pipeline_mode<synchronous>, transform_indices = @transform_9, window_bounds = array<i64: 32, 32>}, {pipeline_mode = #tpu.pipeline_mode<synchronous>, transform_indices = @transform_10, window_bounds = array<i64: 32, 32>}, {pipeline_mode = #tpu.pipeline_mode<synchronous>, transform_indices = @transform_11, window_bounds = array<i64: 32, 32>}, {pipeline_mode = #tpu.pipeline_mode<synchronous>, transform_indices = @transform_12, window_bounds = array<i64: 32, 32>}, {pipeline_mode = #tpu.pipeline_mode<synchronous>, transform_indices = @transform_13, window_bounds = array<i64: 32, 32>}, {transform_indices = @transform_14, window_bounds = array<i64: 1, 3, 32, 32>}]} {
    %c0 = arith.constant 0 : index
    %c0_0 = arith.constant 0 : index
    %c0_1 = arith.constant 0 : index
    %0 = vector.load %arg2[%c0, %c0_0, %c0_1] : memref<1x32x32xf32, #tpu.memory_space<vmem>>, vector<1x32x32xf32>
    %1 = vector.shape_cast %0 : vector<1x32x32xf32> to vector<32x32xf32>
    %c0_2 = arith.constant 0 : index
    %c0_3 = arith.constant 0 : index
    %2 = vector.load %arg3[%c0_2, %c0_3] : memref<32x32xf32, #tpu.memory_space<vmem>>, vector<32x32xf32>
    %cst = arith.constant dense<0.000000e+00> : vector<32x32xf32>
    %3 = tpu.matmul %2, %1, %cst {dimension_numbers = #tpu.dot_dimension_numbers<[1], [0], [0], [1], [0, 0, 1, 1], [], []>} : vector<32x32xf32>, vector<32x32xf32>, vector<32x32xf32> -> vector<32x32xf32>
    %c0_4 = arith.constant 0 : index
    %c0_5 = arith.constant 0 : index
    %4 = vector.load %arg4[%c0_4, %c0_5] : memref<32x32xf32, #tpu.memory_space<vmem>>, vector<32x32xf32>
    %cst_6 = arith.constant dense<0.000000e+00> : vector<32x32xf32>
    %5 = tpu.matmul %4, %1, %cst_6 {dimension_numbers = #tpu.dot_dimension_numbers<[1], [0], [0], [1], [0, 0, 1, 1], [], []>} : vector<32x32xf32>, vector<32x32xf32>, vector<32x32xf32> -> vector<32x32xf32>
    %c0_7 = arith.constant 0 : index
    %c0_8 = arith.constant 0 : index
    %6 = vector.load %arg5[%c0_7, %c0_8] : memref<32x32xf32, #tpu.memory_space<vmem>>, vector<32x32xf32>
    %cst_9 = arith.constant dense<0.000000e+00> : vector<32x32xf32>
    %7 = tpu.matmul %3, %6, %cst_9 {dimension_numbers = #tpu.dot_dimension_numbers<[1], [0], [0], [1], [0, 0, 1, 1], [], []>} : vector<32x32xf32>, vector<32x32xf32>, vector<32x32xf32> -> vector<32x32xf32>
    %c0_10 = arith.constant 0 : index
    %c0_11 = arith.constant 0 : index
    %8 = vector.load %arg6[%c0_10, %c0_11] : memref<32x32xf32, #tpu.memory_space<vmem>>, vector<32x32xf32>
    %cst_12 = arith.constant dense<0.000000e+00> : vector<32x32xf32>
    %9 = tpu.matmul %5, %8, %cst_12 {dimension_numbers = #tpu.dot_dimension_numbers<[1], [0], [0], [1], [0, 0, 1, 1], [], []>} : vector<32x32xf32>, vector<32x32xf32>, vector<32x32xf32> -> vector<32x32xf32>
    %10 = arith.subf %7, %9 : vector<32x32xf32>
    %c0_13 = arith.constant 0 : index
    %c0_14 = arith.constant 0 : index
    %11 = vector.load %arg6[%c0_13, %c0_14] : memref<32x32xf32, #tpu.memory_space<vmem>>, vector<32x32xf32>
    %cst_15 = arith.constant dense<0.000000e+00> : vector<32x32xf32>
    %12 = tpu.matmul %3, %11, %cst_15 {dimension_numbers = #tpu.dot_dimension_numbers<[1], [0], [0], [1], [0, 0, 1, 1], [], []>} : vector<32x32xf32>, vector<32x32xf32>, vector<32x32xf32> -> vector<32x32xf32>
    %c0_16 = arith.constant 0 : index
    %c0_17 = arith.constant 0 : index
    %13 = vector.load %arg5[%c0_16, %c0_17] : memref<32x32xf32, #tpu.memory_space<vmem>>, vector<32x32xf32>
    %cst_18 = arith.constant dense<0.000000e+00> : vector<32x32xf32>
    %14 = tpu.matmul %5, %13, %cst_18 {dimension_numbers = #tpu.dot_dimension_numbers<[1], [0], [0], [1], [0, 0, 1, 1], [], []>} : vector<32x32xf32>, vector<32x32xf32>, vector<32x32xf32> -> vector<32x32xf32>
    %15 = arith.addf %12, %14 : vector<32x32xf32>
    %16 = arith.mulf %10, %10 : vector<32x32xf32>
    %17 = arith.mulf %15, %15 : vector<32x32xf32>
    %18 = arith.addf %16, %17 : vector<32x32xf32>
    %19 = math.sqrt %18 : vector<32x32xf32>
    %cst_19 = arith.constant 4.5399931E-5 : f32
    %20 = vector.broadcast %cst_19 : f32 to vector<32x32xf32>
    %21 = arith.addf %19, %20 : vector<32x32xf32>
    %22 = math.log %21 : vector<32x32xf32>
    %c0_20 = arith.constant 0 : index
    %c0_21 = arith.constant 0 : index
    %23 = vector.load %arg11[%c0_20, %c0_21] : memref<32x32xf32, #tpu.memory_space<vmem>>, vector<32x32xf32>
    %cst_22 = arith.constant dense<0.000000e+00> : vector<32x32xf32>
    %24 = tpu.matmul %23, %22, %cst_22 {dimension_numbers = #tpu.dot_dimension_numbers<[1], [0], [0], [1], [0, 0, 1, 1], [], []>} : vector<32x32xf32>, vector<32x32xf32>, vector<32x32xf32> -> vector<32x32xf32>
    %c0_23 = arith.constant 0 : index
    %c0_24 = arith.constant 0 : index
    %25 = vector.load %arg12[%c0_23, %c0_24] : memref<32x32xf32, #tpu.memory_space<vmem>>, vector<32x32xf32>
    %cst_25 = arith.constant dense<0.000000e+00> : vector<32x32xf32>
    %26 = tpu.matmul %24, %25, %cst_25 {dimension_numbers = #tpu.dot_dimension_numbers<[1], [0], [0], [1], [0, 0, 1, 1], [], []>} : vector<32x32xf32>, vector<32x32xf32>, vector<32x32xf32> -> vector<32x32xf32>
    %27 = arith.subf %22, %26 : vector<32x32xf32>
    %28 = math.exp %27 : vector<32x32xf32>
    %cst_26 = arith.constant 1.000000e-30 : f32
    %29 = vector.broadcast %cst_26 : f32 to vector<32x32xf32>
    %30 = arith.maximumf %19, %29 : vector<32x32xf32>
    %31 = arith.divf %28, %30 : vector<32x32xf32>
    %32 = arith.mulf %31, %10 : vector<32x32xf32>
    %33 = arith.mulf %31, %15 : vector<32x32xf32>
    %c0_27 = arith.constant 0 : index
    %c0_28 = arith.constant 0 : index
    %34 = vector.load %arg7[%c0_27, %c0_28] : memref<32x32xf32, #tpu.memory_space<vmem>>, vector<32x32xf32>
    %cst_29 = arith.constant dense<0.000000e+00> : vector<32x32xf32>
    %35 = tpu.matmul %34, %32, %cst_29 {dimension_numbers = #tpu.dot_dimension_numbers<[1], [0], [0], [1], [0, 0, 1, 1], [], []>} : vector<32x32xf32>, vector<32x32xf32>, vector<32x32xf32> -> vector<32x32xf32>
    %c0_30 = arith.constant 0 : index
    %c0_31 = arith.constant 0 : index
    %36 = vector.load %arg8[%c0_30, %c0_31] : memref<32x32xf32, #tpu.memory_space<vmem>>, vector<32x32xf32>
    %cst_32 = arith.constant dense<0.000000e+00> : vector<32x32xf32>
    %37 = tpu.matmul %36, %33, %cst_32 {dimension_numbers = #tpu.dot_dimension_numbers<[1], [0], [0], [1], [0, 0, 1, 1], [], []>} : vector<32x32xf32>, vector<32x32xf32>, vector<32x32xf32> -> vector<32x32xf32>
    %38 = arith.subf %35, %37 : vector<32x32xf32>
    %c0_33 = arith.constant 0 : index
    %c0_34 = arith.constant 0 : index
    %39 = vector.load %arg7[%c0_33, %c0_34] : memref<32x32xf32, #tpu.memory_space<vmem>>, vector<32x32xf32>
    %cst_35 = arith.constant dense<0.000000e+00> : vector<32x32xf32>
    %40 = tpu.matmul %39, %33, %cst_35 {dimension_numbers = #tpu.dot_dimension_numbers<[1], [0], [0], [1], [0, 0, 1, 1], [], []>} : vector<32x32xf32>, vector<32x32xf32>, vector<32x32xf32> -> vector<32x32xf32>
    %c0_36 = arith.constant 0 : index
    %c0_37 = arith.constant 0 : index
    %41 = vector.load %arg8[%c0_36, %c0_37] : memref<32x32xf32, #tpu.memory_space<vmem>>, vector<32x32xf32>
    %cst_38 = arith.constant dense<0.000000e+00> : vector<32x32xf32>
    %42 = tpu.matmul %41, %32, %cst_38 {dimension_numbers = #tpu.dot_dimension_numbers<[1], [0], [0], [1], [0, 0, 1, 1], [], []>} : vector<32x32xf32>, vector<32x32xf32>, vector<32x32xf32> -> vector<32x32xf32>
    %43 = arith.addf %40, %42 : vector<32x32xf32>
    %c0_39 = arith.constant 0 : index
    %c0_40 = arith.constant 0 : index
    %44 = vector.load %arg9[%c0_39, %c0_40] : memref<32x32xf32, #tpu.memory_space<vmem>>, vector<32x32xf32>
    %cst_41 = arith.constant dense<0.000000e+00> : vector<32x32xf32>
    %45 = tpu.matmul %38, %44, %cst_41 {dimension_numbers = #tpu.dot_dimension_numbers<[1], [0], [0], [1], [0, 0, 1, 1], [], []>} : vector<32x32xf32>, vector<32x32xf32>, vector<32x32xf32> -> vector<32x32xf32>
    %c0_42 = arith.constant 0 : index
    %c0_43 = arith.constant 0 : index
    %46 = vector.load %arg10[%c0_42, %c0_43] : memref<32x32xf32, #tpu.memory_space<vmem>>, vector<32x32xf32>
    %cst_44 = arith.constant dense<0.000000e+00> : vector<32x32xf32>
    %47 = tpu.matmul %43, %46, %cst_44 {dimension_numbers = #tpu.dot_dimension_numbers<[1], [0], [0], [1], [0, 0, 1, 1], [], []>} : vector<32x32xf32>, vector<32x32xf32>, vector<32x32xf32> -> vector<32x32xf32>
    %48 = arith.subf %45, %47 : vector<32x32xf32>
    %c0_45 = arith.constant 0 : index
    %c0_46 = arith.constant 0 : index
    %49 = vector.load %arg10[%c0_45, %c0_46] : memref<32x32xf32, #tpu.memory_space<vmem>>, vector<32x32xf32>
    %cst_47 = arith.constant dense<0.000000e+00> : vector<32x32xf32>
    %50 = tpu.matmul %38, %49, %cst_47 {dimension_numbers = #tpu.dot_dimension_numbers<[1], [0], [0], [1], [0, 0, 1, 1], [], []>} : vector<32x32xf32>, vector<32x32xf32>, vector<32x32xf32> -> vector<32x32xf32>
    %c0_48 = arith.constant 0 : index
    %c0_49 = arith.constant 0 : index
    %51 = vector.load %arg9[%c0_48, %c0_49] : memref<32x32xf32, #tpu.memory_space<vmem>>, vector<32x32xf32>
    %cst_50 = arith.constant dense<0.000000e+00> : vector<32x32xf32>
    %52 = tpu.matmul %43, %51, %cst_50 {dimension_numbers = #tpu.dot_dimension_numbers<[1], [0], [0], [1], [0, 0, 1, 1], [], []>} : vector<32x32xf32>, vector<32x32xf32>, vector<32x32xf32> -> vector<32x32xf32>
    %53 = arith.addf %50, %52 : vector<32x32xf32>
    %54 = arith.mulf %48, %48 : vector<32x32xf32>
    %55 = arith.mulf %53, %53 : vector<32x32xf32>
    %56 = arith.addf %54, %55 : vector<32x32xf32>
    %57 = math.sqrt %56 : vector<32x32xf32>
    %c0_51 = arith.constant 0 : index
    %c0_52 = arith.constant 0 : index
    %58 = vector.load %arg13[%c0_51, %c0_52] : memref<32x32xf32, #tpu.memory_space<vmem>>, vector<32x32xf32>
    %cst_53 = arith.constant dense<0.000000e+00> : vector<32x32xf32>
    %59 = tpu.matmul %58, %57, %cst_53 {dimension_numbers = #tpu.dot_dimension_numbers<[1], [0], [0], [1], [0, 0, 1, 1], [], []>} : vector<32x32xf32>, vector<32x32xf32>, vector<32x32xf32> -> vector<32x32xf32>
    %c0_54 = arith.constant 0 : index
    %c0_55 = arith.constant 0 : index
    %60 = vector.load %arg14[%c0_54, %c0_55] : memref<32x32xf32, #tpu.memory_space<vmem>>, vector<32x32xf32>
    %cst_56 = arith.constant dense<0.000000e+00> : vector<32x32xf32>
    %61 = tpu.matmul %59, %60, %cst_56 {dimension_numbers = #tpu.dot_dimension_numbers<[1], [0], [0], [1], [0, 0, 1, 1], [], []>} : vector<32x32xf32>, vector<32x32xf32>, vector<32x32xf32> -> vector<32x32xf32>
    %c0_57 = arith.constant 0 : index
    %c0_58 = arith.constant 0 : index
    %62 = memref.load %arg1[%c0_57, %c0_58] : memref<3x3xf32, #tpu.memory_space<smem>>
    %63 = vector.broadcast %62 : f32 to vector<32x32xf32>
    %64 = arith.mulf %63, %61 : vector<32x32xf32>
    %c0_59 = arith.constant 0 : index
    %c1 = arith.constant 1 : index
    %65 = memref.load %arg1[%c0_59, %c1] : memref<3x3xf32, #tpu.memory_space<smem>>
    %66 = vector.broadcast %65 : f32 to vector<32x32xf32>
    %67 = arith.mulf %66, %1 : vector<32x32xf32>
    %68 = arith.addf %64, %67 : vector<32x32xf32>
    %c0_60 = arith.constant 0 : index
    %c2 = arith.constant 2 : index
    %69 = memref.load %arg1[%c0_60, %c2] : memref<3x3xf32, #tpu.memory_space<smem>>
    %70 = vector.broadcast %69 : f32 to vector<32x32xf32>
    %71 = arith.addf %68, %70 : vector<32x32xf32>
    %cst_61 = arith.constant 0.000000e+00 : f32
    %72 = vector.broadcast %cst_61 : f32 to vector<32x32xf32>
    %73 = arith.maximumf %71, %72 : vector<32x32xf32>
    %c0_62 = arith.constant 0 : index
    %c0_63 = arith.constant 0 : index
    %c0_64 = arith.constant 0 : index
    %c0_65 = arith.constant 0 : index
    %74 = vector.load %arg15[%c0_62, %c0_63, %c0_64, %c0_65] : memref<1x3x32x32xf32, #tpu.memory_space<vmem>>, vector<1x1x32x32xf32>
    %75 = vector.shape_cast %74 : vector<1x1x32x32xf32> to vector<32x32xf32>
    %76 = vector.shape_cast %73 : vector<32x32xf32> to vector<1x1x32x32xf32>
    tpu.vector_store %arg15[%c0_62, %c0_63, %c0_64, %c0_65], %76 {strides = array<i32>} : memref<1x3x32x32xf32, #tpu.memory_space<vmem>>, vector<1x1x32x32xf32>,
    %c1_66 = arith.constant 1 : index
    %c0_67 = arith.constant 0 : index
    %77 = memref.load %arg1[%c1_66, %c0_67] : memref<3x3xf32, #tpu.memory_space<smem>>
    %78 = vector.broadcast %77 : f32 to vector<32x32xf32>
    %79 = arith.mulf %78, %61 : vector<32x32xf32>
    %c1_68 = arith.constant 1 : index
    %c1_69 = arith.constant 1 : index
    %80 = memref.load %arg1[%c1_68, %c1_69] : memref<3x3xf32, #tpu.memory_space<smem>>
    %81 = vector.broadcast %80 : f32 to vector<32x32xf32>
    %82 = arith.mulf %81, %1 : vector<32x32xf32>
    %83 = arith.addf %79, %82 : vector<32x32xf32>
    %c1_70 = arith.constant 1 : index
    %c2_71 = arith.constant 2 : index
    %84 = memref.load %arg1[%c1_70, %c2_71] : memref<3x3xf32, #tpu.memory_space<smem>>
    %85 = vector.broadcast %84 : f32 to vector<32x32xf32>
    %86 = arith.addf %83, %85 : vector<32x32xf32>
    %cst_72 = arith.constant 0.000000e+00 : f32
    %87 = vector.broadcast %cst_72 : f32 to vector<32x32xf32>
    %88 = arith.maximumf %86, %87 : vector<32x32xf32>
    %c0_73 = arith.constant 0 : index
    %c1_74 = arith.constant 1 : index
    %c0_75 = arith.constant 0 : index
    %c0_76 = arith.constant 0 : index
    %89 = vector.load %arg15[%c0_73, %c1_74, %c0_75, %c0_76] : memref<1x3x32x32xf32, #tpu.memory_space<vmem>>, vector<1x1x32x32xf32>
    %90 = vector.shape_cast %89 : vector<1x1x32x32xf32> to vector<32x32xf32>
    %91 = vector.shape_cast %88 : vector<32x32xf32> to vector<1x1x32x32xf32>
    tpu.vector_store %arg15[%c0_73, %c1_74, %c0_75, %c0_76], %91 {strides = array<i32>} : memref<1x3x32x32xf32, #tpu.memory_space<vmem>>, vector<1x1x32x32xf32>,
    %c2_77 = arith.constant 2 : index
    %c0_78 = arith.constant 0 : index
    %92 = memref.load %arg1[%c2_77, %c0_78] : memref<3x3xf32, #tpu.memory_space<smem>>
    %93 = vector.broadcast %92 : f32 to vector<32x32xf32>
    %94 = arith.mulf %93, %61 : vector<32x32xf32>
    %c2_79 = arith.constant 2 : index
    %c1_80 = arith.constant 1 : index
    %95 = memref.load %arg1[%c2_79, %c1_80] : memref<3x3xf32, #tpu.memory_space<smem>>
    %96 = vector.broadcast %95 : f32 to vector<32x32xf32>
    %97 = arith.mulf %96, %1 : vector<32x32xf32>
    %98 = arith.addf %94, %97 : vector<32x32xf32>
    %c2_81 = arith.constant 2 : index
    %c2_82 = arith.constant 2 : index
    %99 = memref.load %arg1[%c2_81, %c2_82] : memref<3x3xf32, #tpu.memory_space<smem>>
    %100 = vector.broadcast %99 : f32 to vector<32x32xf32>
    %101 = arith.addf %98, %100 : vector<32x32xf32>
    %cst_83 = arith.constant 0.000000e+00 : f32
    %102 = vector.broadcast %cst_83 : f32 to vector<32x32xf32>
    %103 = arith.maximumf %101, %102 : vector<32x32xf32>
    %c0_84 = arith.constant 0 : index
    %c2_85 = arith.constant 2 : index
    %c0_86 = arith.constant 0 : index
    %c0_87 = arith.constant 0 : index
    %104 = vector.load %arg15[%c0_84, %c2_85, %c0_86, %c0_87] : memref<1x3x32x32xf32, #tpu.memory_space<vmem>>, vector<1x1x32x32xf32>
    %105 = vector.shape_cast %104 : vector<1x1x32x32xf32> to vector<32x32xf32>
    %106 = vector.shape_cast %103 : vector<32x32xf32> to vector<1x1x32x32xf32>
    tpu.vector_store %arg15[%c0_84, %c2_85, %c0_86, %c0_87], %106 {strides = array<i32>} : memref<1x3x32x32xf32, #tpu.memory_space<vmem>>, vector<1x1x32x32xf32>,
    return
  }
  func.func @transform_0(%arg0: i32) -> (i32, i32) {
    %c0_i32 = arith.constant 0 : i32
    %c0_i32_0 = arith.constant 0 : i32
    %c0_i32_1 = arith.constant 0 : i32
    return %c0_i32, %c0_i32_0 : i32, i32
  }
  func.func @transform_1(%arg0: i32) -> (i32, i32, i32) {
    %c0_i32 = arith.constant 0 : i32
    %c0_i32_0 = arith.constant 0 : i32
    %c0_i32_1 = arith.constant 0 : i32
    return %arg0, %c0_i32, %c0_i32_0 : i32, i32, i32
  }
  func.func @transform_2(%arg0: i32) -> (i32, i32) {
    %c0_i32 = arith.constant 0 : i32
    %c0_i32_0 = arith.constant 0 : i32
    %c0_i32_1 = arith.constant 0 : i32
    return %c0_i32, %c0_i32_0 : i32, i32
  }
  func.func @transform_3(%arg0: i32) -> (i32, i32) {
    %c0_i32 = arith.constant 0 : i32
    %c0_i32_0 = arith.constant 0 : i32
    %c0_i32_1 = arith.constant 0 : i32
    return %c0_i32, %c0_i32_0 : i32, i32
  }
  func.func @transform_4(%arg0: i32) -> (i32, i32) {
    %c0_i32 = arith.constant 0 : i32
    %c0_i32_0 = arith.constant 0 : i32
    %c0_i32_1 = arith.constant 0 : i32
    return %c0_i32, %c0_i32_0 : i32, i32
  }
  func.func @transform_5(%arg0: i32) -> (i32, i32) {
    %c0_i32 = arith.constant 0 : i32
    %c0_i32_0 = arith.constant 0 : i32
    %c0_i32_1 = arith.constant 0 : i32
    return %c0_i32, %c0_i32_0 : i32, i32
  }
  func.func @transform_6(%arg0: i32) -> (i32, i32) {
    %c0_i32 = arith.constant 0 : i32
    %c0_i32_0 = arith.constant 0 : i32
    %c0_i32_1 = arith.constant 0 : i32
    return %c0_i32, %c0_i32_0 : i32, i32
  }
  func.func @transform_7(%arg0: i32) -> (i32, i32) {
    %c0_i32 = arith.constant 0 : i32
    %c0_i32_0 = arith.constant 0 : i32
    %c0_i32_1 = arith.constant 0 : i32
    return %c0_i32, %c0_i32_0 : i32, i32
  }
  func.func @transform_8(%arg0: i32) -> (i32, i32) {
    %c0_i32 = arith.constant 0 : i32
    %c0_i32_0 = arith.constant 0 : i32
    %c0_i32_1 = arith.constant 0 : i32
    return %c0_i32, %c0_i32_0 : i32, i32
  }
  func.func @transform_9(%arg0: i32) -> (i32, i32) {
    %c0_i32 = arith.constant 0 : i32
    %c0_i32_0 = arith.constant 0 : i32
    %c0_i32_1 = arith.constant 0 : i32
    return %c0_i32, %c0_i32_0 : i32, i32
  }
  func.func @transform_10(%arg0: i32) -> (i32, i32) {
    %c0_i32 = arith.constant 0 : i32
    %c0_i32_0 = arith.constant 0 : i32
    %c0_i32_1 = arith.constant 0 : i32
    return %c0_i32, %c0_i32_0 : i32, i32
  }
  func.func @transform_11(%arg0: i32) -> (i32, i32) {
    %c0_i32 = arith.constant 0 : i32
    %c0_i32_0 = arith.constant 0 : i32
    %c0_i32_1 = arith.constant 0 : i32
    return %c0_i32, %c0_i32_0 : i32, i32
  }
  func.func @transform_12(%arg0: i32) -> (i32, i32) {
    %c0_i32 = arith.constant 0 : i32
    %c0_i32_0 = arith.constant 0 : i32
    %c0_i32_1 = arith.constant 0 : i32
    return %c0_i32, %c0_i32_0 : i32, i32
  }
  func.func @transform_13(%arg0: i32) -> (i32, i32) {
    %c0_i32 = arith.constant 0 : i32
    %c0_i32_0 = arith.constant 0 : i32
    %c0_i32_1 = arith.constant 0 : i32
    return %c0_i32, %c0_i32_0 : i32, i32
  }
  func.func @transform_14(%arg0: i32) -> (i32, i32, i32, i32) {
    %c0_i32 = arith.constant 0 : i32
    %c0_i32_0 = arith.constant 0 : i32
    %c0_i32_1 = arith.constant 0 : i32
    %c0_i32_2 = arith.constant 0 : i32
    return %arg0, %c0_i32, %c0_i32_0, %c0_i32_1 : i32, i32, i32, i32
  }
}

</mosaic_0001>

<llo_original>
// kernel: tpu_custom_call.1
$region0: #{tpu_custom_call.1}
  #allocation0 [shape = 'u32[]', space=smem, size = 0x4, offset = 0x4, fixed_abs, tag = 'smem constant byte address 0x4 - core index']
  #allocation1 [shape = 'u32[144,128]{1,0:T(1,128)}', space=vmem, size = 0x12000, scoped, tag = 'internal scratch']
  %s0 = inlined_call_operand.hbm [shape: f32[3,3], index: 0, kind: input, shape index: {}]
  %s1 = inlined_call_operand.hbm [shape: f32[2,32,32], index: 1, kind: input, shape index: {}]
  %s2 = inlined_call_operand.hbm [shape: f32[32,32], index: 2, kind: input, shape index: {}]
  %s3 = inlined_call_operand.hbm [shape: f32[32,32], index: 3, kind: input, shape index: {}]
  %s4 = inlined_call_operand.hbm [shape: f32[32,32], index: 4, kind: input, shape index: {}]
  %s5 = inlined_call_operand.hbm [shape: f32[32,32], index: 5, kind: input, shape index: {}]
  %s6 = inlined_call_operand.hbm [shape: f32[32,32], index: 6, kind: input, shape index: {}]
  %s7 = inlined_call_operand.hbm [shape: f32[32,32], index: 7, kind: input, shape index: {}]
  %s8 = inlined_call_operand.hbm [shape: f32[32,32], index: 8, kind: input, shape index: {}]
  %s9 = inlined_call_operand.hbm [shape: f32[32,32], index: 9, kind: input, shape index: {}]
  %s10 = inlined_call_operand.hbm [shape: f32[32,32], index: 10, kind: input, shape index: {}]
  %s11 = inlined_call_operand.hbm [shape: f32[32,32], index: 11, kind: input, shape index: {}]
  %s12 = inlined_call_operand.hbm [shape: f32[32,32], index: 12, kind: input, shape index: {}]
  %s13 = inlined_call_operand.hbm [shape: f32[32,32], index: 13, kind: input, shape index: {}]
  %s14 = inlined_call_operand.hbm [shape: f32[2,3,32,32], index: 14, kind: output, shape index: {}]
  %s15 = sld [smem:[#allocation0]]
  $region145: #{tpu_custom_call.1} parent=0
    _
  %s17 = ssub.s32 1, %s15
  %s18 = scalar_select 0, %s17, %s15
  $region1: #{tpu_custom_call.1} parent=0
    #allocation2 [shape = 'u8[2048]{0}', space=smem, size = 0x800, scoped, tag = 'input window, operand 0, single buffered']
    #allocation3 [shape = 's32[2]{0}', space=sflag, size = 0x8, scoped, tag = 'scoped memory for tpu_custom_call.1']
    #allocation4 [shape = 's32[2]{0}', space=sflag, size = 0x8, scoped, tag = 'scoped memory for tpu_custom_call.1']
    #allocation5 [shape = 's32[2]{0}', space=sflag, size = 0x8, scoped, tag = 'scoped memory for tpu_custom_call.1']
    #allocation6 [shape = 'u8[32768]{0}', space=vmem, size = 0x8000, scoped, tag = 'input window, operand 1']
    #allocation7 [shape = 'u8[16384]{0}', space=vmem, size = 0x4000, scoped, tag = 'input window, operand 2, single buffered']
    #allocation8 [shape = 's32[1]{0}', space=sflag, size = 0x4, scoped, tag = 'scoped memory for tpu_custom_call.1']
    #allocation9 [shape = 'u8[16384]{0}', space=vmem, size = 0x4000, scoped, tag = 'input window, operand 3, single buffered']
    #allocation10 [shape = 'u8[16384]{0}', space=vmem, size = 0x4000, scoped, tag = 'input window, operand 4, single buffered']
    #allocation11 [shape = 's32[1]{0}', space=sflag, size = 0x4, scoped, tag = 'scoped memory for tpu_custom_call.1']
    #allocation12 [shape = 'u8[16384]{0}', space=vmem, size = 0x4000, scoped, tag = 'input window, operand 5, single buffered']
    #allocation13 [shape = 'u8[16384]{0}', space=vmem, size = 0x4000, scoped, tag = 'input window, operand 6, single buffered']
    #allocation14 [shape = 's32[1]{0}', space=sflag, size = 0x4, scoped, tag = 'scoped memory for tpu_custom_call.1']
    #allocation15 [shape = 'u8[16384]{0}', space=vmem, size = 0x4000, scoped, tag = 'input window, operand 7, single buffered']
    #allocation16 [shape = 'u8[16384]{0}', space=vmem, size = 0x4000, scoped, tag = 'input window, operand 8, single buffered']
    #allocation17 [shape = 's32[1]{0}', space=sflag, size = 0x4, scoped, tag = 'scoped memory for tpu_custom_call.1']
    #allocation18 [shape = 'u8[16384]{0}', space=vmem, size = 0x4000, scoped, tag = 'input window, operand 9, single buffered']
    #allocation19 [shape = 'u8[16384]{0}', space=vmem, size = 0x4000, scoped, tag = 'input window, operand 10, single buffered']
    #allocation20 [shape = 's32[1]{0}', space=sflag, size = 0x4, scoped, tag = 'scoped memory for tpu_custom_call.1']
    #allocation21 [shape = 'u8[16384]{0}', space=vmem, size = 0x4000, scoped, tag = 'input window, operand 11, single buffered']
    #allocation22 [shape = 'u8[16384]{0}', space=vmem, size = 0x4000, scoped, tag = 'input window, operand 12, single buffered']
    #allocation23 [shape = 's32[1]{0}', space=sflag, size = 0x4, scoped, tag = 'scoped memory for tpu_custom_call.1']
    #allocation24 [shape = 'u8[16384]{0}', space=vmem, size = 0x4000, scoped, tag = 'input window, operand 13, single buffered']
    #allocation25 [shape = 'u8[98304]{0}', space=vmem, size = 0x18000, scoped, tag = 'output window, operand 0']
    %19 = vsyncpa [#allocation5], 0
    %20 = vsyncpa [#allocation3], 0
    %s21 = scalar_lea.sflag [#allocation3], 1
    %22 = vsyncpa %s21, 0
    %23 = vsyncpa [#allocation8], 0
    %24 = vsyncpa [#allocation11], 0
    %25 = vsyncpa [#allocation14], 0
    %26 = vsyncpa [#allocation17], 0
    %27 = vsyncpa [#allocation20], 0
    %28 = vsyncpa [#allocation23], 0
    %29 = vsyncpa [#allocation4], 0
    %s30 = scalar_lea.sflag [#allocation4], 1
    %31 = vsyncpa %s30, 0
    loop: start=0, step=1, limit=4
    $region2: #{tpu_custom_call.1} parent=1 // loop_pre_header
      _
    $region3: #{tpu_custom_call.1} parent=1 // loop_header
      %s33 = sphi 0, %s37
      %p34 = scmp.ge.s32.totalorder %s33, 4
      %s41 = sphi 0, %s41
      %s43 = sphi 0, %s41
      %s44 = sphi 0, %s43
      %s58 = sphi 0, %s44
      %s64 = sphi 0, %s66
      %s67 = sphi 0, %s64
      %s68 = sphi 0, %s67
      %s84 = sphi 0, %s68
      %s88 = sphi 0, %s88
      %s90 = sphi 0, %s88
      %s91 = sphi 0, %s90
      %s105 = sphi 0, %s91
      %s109 = sphi 0, %s109
      %s111 = sphi 0, %s109
      %s112 = sphi 0, %s111
      %s126 = sphi 0, %s112
      %s130 = sphi 0, %s130
      %s132 = sphi 0, %s130
      %s133 = sphi 0, %s132
      %s147 = sphi 0, %s133
      %s151 = sphi 0, %s151
      %s153 = sphi 0, %s151
      %s154 = sphi 0, %s153
      %s168 = sphi 0, %s154
      %s172 = sphi 0, %s172
      %s174 = sphi 0, %s172
      %s175 = sphi 0, %s174
      %s189 = sphi 0, %s175
      %s193 = sphi 0, %s193
      %s195 = sphi 0, %s193
      %s196 = sphi 0, %s195
      %s210 = sphi 0, %s196
      %s214 = sphi 0, %s214
      %s216 = sphi 0, %s214
      %s217 = sphi 0, %s216
      %s231 = sphi 0, %s217
      %s235 = sphi 0, %s235
      %s237 = sphi 0, %s235
      %s238 = sphi 0, %s237
      %s252 = sphi 0, %s238
      %s256 = sphi 0, %s256
      %s258 = sphi 0, %s256
      %s259 = sphi 0, %s258
      %s273 = sphi 0, %s259
      %s277 = sphi 0, %s277
      %s279 = sphi 0, %s277
      %s280 = sphi 0, %s279
      %s294 = sphi 0, %s280
      %s298 = sphi 0, %s298
      %s300 = sphi 0, %s298
      %s301 = sphi 0, %s300
      %s315 = sphi 0, %s301
      %s319 = sphi 0, %s319
      %s321 = sphi 0, %s319
      %s322 = sphi 0, %s321
      %s336 = sphi 0, %s322
      %s342 = sphi 0, %s344
      %s345 = sphi 0, %s342
      %s346 = sphi 0, %s345
      %s362 = sphi 0, %s346
    $region4: #{tpu_custom_call.1} parent=1 // loop_header_branch
      %36 = sbr.rel (%p34) target = $region8
    $region5: #{tpu_custom_call.1} parent=1 // loop_body
      %s38 = ssub.s32 %s33, 1
      %s39 = ssub.s32 %s33, 2
      %s40 = sadd.s32 %s33, 1
      %s42 = sadd.s32 %s41, 1
      %p45 = scmp.eq.s32.totalorder %s33, 1
      %p46 = scmp.ne.s32.totalorder %s41, %s43
      %p47 = scmp.eq.s32.totalorder %s33, 0
      %p48 = por %p46, %p47
      %p49 = scmp.ne.s32.totalorder %s41, %s43
      %p50 = scmp.eq.s32.totalorder %s38, 1
      %p51 = por %p49, %p50
      %p52 = scmp.ne.s32.totalorder %s43, %s44
      %p53 = scmp.eq.s32.totalorder %s38, 0
      %p54 = por %p52, %p53
      %p55 = scmp.ne.s32.totalorder %s43, %s44
      %p56 = scmp.eq.s32.totalorder %s39, 1
      %p57 = por %p55, %p56
      %p59 = scmp.ne.s32.totalorder %s44, %s58
      %p60 = scmp.eq.s32.totalorder %s39, 0
      %p61 = por %p59, %p60
      %s62 = ssub.s32 %s33, %s40
      %p63 = scmp.eq.s32.totalorder %s62, 0
      %s65 = sadd.s32 %s64, 1
      %s66 = scalar_select %p63, %s64, %s65
      %p69 = pneg %p63
      %p70 = scmp.eq.s32.totalorder %s33, 1
      %p71 = por %p69, %p70
      %p72 = scmp.ne.s32.totalorder %s64, %s67
      %p73 = scmp.eq.s32.totalorder %s33, 0
      %p74 = por %p72, %p73
      %p75 = scmp.ne.s32.totalorder %s64, %s67
      %p76 = scmp.eq.s32.totalorder %s38, 1
      %p77 = por %p75, %p76
      %p78 = scmp.ne.s32.totalorder %s67, %s68
      %p79 = scmp.eq.s32.totalorder %s38, 0
      %p80 = por %p78, %p79
      %p81 = scmp.ne.s32.totalorder %s67, %s68
      %p82 = scmp.eq.s32.totalorder %s39, 1
      %p83 = por %p81, %p82
      %p85 = scmp.ne.s32.totalorder %s68, %s84
      %p86 = scmp.eq.s32.totalorder %s39, 0
      %p87 = por %p85, %p86
      %s89 = sadd.s32 %s88, 1
      %p92 = scmp.eq.s32.totalorder %s33, 1
      %p93 = scmp.ne.s32.totalorder %s88, %s90
      %p94 = scmp.eq.s32.totalorder %s33, 0
      %p95 = por %p93, %p94
      %p96 = scmp.ne.s32.totalorder %s88, %s90
      %p97 = scmp.eq.s32.totalorder %s38, 1
      %p98 = por %p96, %p97
      %p99 = scmp.ne.s32.totalorder %s90, %s91
      %p100 = scmp.eq.s32.totalorder %s38, 0
      %p101 = por %p99, %p100
      %p102 = scmp.ne.s32.totalorder %s90, %s91
      %p103 = scmp.eq.s32.totalorder %s39, 1
      %p104 = por %p102, %p103
      %p106 = scmp.ne.s32.totalorder %s91, %s105
      %p107 = scmp.eq.s32.totalorder %s39, 0
      %p108 = por %p106, %p107
      %s110 = sadd.s32 %s109, 1
      %p113 = scmp.eq.s32.totalorder %s33, 1
      %p114 = scmp.ne.s32.totalorder %s109, %s111
      %p115 = scmp.eq.s32.totalorder %s33, 0
      %p116 = por %p114, %p115
      %p117 = scmp.ne.s32.totalorder %s109, %s111
      %p118 = scmp.eq.s32.totalorder %s38, 1
      %p119 = por %p117, %p118
      %p120 = scmp.ne.s32.totalorder %s111, %s112
      %p121 = scmp.eq.s32.totalorder %s38, 0
      %p122 = por %p120, %p121
      %p123 = scmp.ne.s32.totalorder %s111, %s112
      %p124 = scmp.eq.s32.totalorder %s39, 1
      %p125 = por %p123, %p124
      %p127 = scmp.ne.s32.totalorder %s112, %s126
      %p128 = scmp.eq.s32.totalorder %s39, 0
      %p129 = por %p127, %p128
      %s131 = sadd.s32 %s130, 1
      %p134 = scmp.eq.s32.totalorder %s33, 1
      %p135 = scmp.ne.s32.totalorder %s130, %s132
      %p136 = scmp.eq.s32.totalorder %s33, 0
      %p137 = por %p135, %p136
      %p138 = scmp.ne.s32.totalorder %s130, %s132
      %p139 = scmp.eq.s32.totalorder %s38, 1
      %p140 = por %p138, %p139
      %p141 = scmp.ne.s32.totalorder %s132, %s133
      %p142 = scmp.eq.s32.totalorder %s38, 0
      %p143 = por %p141, %p142
      %p144 = scmp.ne.s32.totalorder %s132, %s133
      %p145 = scmp.eq.s32.totalorder %s39, 1
      %p146 = por %p144, %p145
      %p148 = scmp.ne.s32.totalorder %s133, %s147
      %p149 = scmp.eq.s32.totalorder %s39, 0
      %p150 = por %p148, %p149
      %s152 = sadd.s32 %s151, 1
      %p155 = scmp.eq.s32.totalorder %s33, 1
      %p156 = scmp.ne.s32.totalorder %s151, %s153
      %p157 = scmp.eq.s32.totalorder %s33, 0
      %p158 = por %p156, %p157
      %p159 = scmp.ne.s32.totalorder %s151, %s153
      %p160 = scmp.eq.s32.totalorder %s38, 1
      %p161 = por %p159, %p160
      %p162 = scmp.ne.s32.totalorder %s153, %s154
      %p163 = scmp.eq.s32.totalorder %s38, 0
      %p164 = por %p162, %p163
      %p165 = scmp.ne.s32.totalorder %s153, %s154
      %p166 = scmp.eq.s32.totalorder %s39, 1
      %p167 = por %p165, %p166
      %p169 = scmp.ne.s32.totalorder %s154, %s168
      %p170 = scmp.eq.s32.totalorder %s39, 0
      %p171 = por %p169, %p170
      %s173 = sadd.s32 %s172, 1
      %p176 = scmp.eq.s32.totalorder %s33, 1
      %p177 = scmp.ne.s32.totalorder %s172, %s174
      %p178 = scmp.eq.s32.totalorder %s33, 0
      %p179 = por %p177, %p178
      %p180 = scmp.ne.s32.totalorder %s172, %s174
      %p181 = scmp.eq.s32.totalorder %s38, 1
      %p182 = por %p180, %p181
      %p183 = scmp.ne.s32.totalorder %s174, %s175
      %p184 = scmp.eq.s32.totalorder %s38, 0
      %p185 = por %p183, %p184
      %p186 = scmp.ne.s32.totalorder %s174, %s175
      %p187 = scmp.eq.s32.totalorder %s39, 1
      %p188 = por %p186, %p187
      %p190 = scmp.ne.s32.totalorder %s175, %s189
      %p191 = scmp.eq.s32.totalorder %s39, 0
      %p192 = por %p190, %p191
      %s194 = sadd.s32 %s193, 1
      %p197 = scmp.eq.s32.totalorder %s33, 1
      %p198 = scmp.ne.s32.totalorder %s193, %s195
      %p199 = scmp.eq.s32.totalorder %s33, 0
      %p200 = por %p198, %p199
      %p201 = scmp.ne.s32.totalorder %s193, %s195
      %p202 = scmp.eq.s32.totalorder %s38, 1
      %p203 = por %p201, %p202
      %p204 = scmp.ne.s32.totalorder %s195, %s196
      %p205 = scmp.eq.s32.totalorder %s38, 0
      %p206 = por %p204, %p205
      %p207 = scmp.ne.s32.totalorder %s195, %s196
      %p208 = scmp.eq.s32.totalorder %s39, 1
      %p209 = por %p207, %p208
      %p211 = scmp.ne.s32.totalorder %s196, %s210
      %p212 = scmp.eq.s32.totalorder %s39, 0
      %p213 = por %p211, %p212
      %s215 = sadd.s32 %s214, 1
      %p218 = scmp.eq.s32.totalorder %s33, 1
      %p219 = scmp.ne.s32.totalorder %s214, %s216
      %p220 = scmp.eq.s32.totalorder %s33, 0
      %p221 = por %p219, %p220
      %p222 = scmp.ne.s32.totalorder %s214, %s216
      %p223 = scmp.eq.s32.totalorder %s38, 1
      %p224 = por %p222, %p223
      %p225 = scmp.ne.s32.totalorder %s216, %s217
      %p226 = scmp.eq.s32.totalorder %s38, 0
      %p227 = por %p225, %p226
      %p228 = scmp.ne.s32.totalorder %s216, %s217
      %p229 = scmp.eq.s32.totalorder %s39, 1
      %p230 = por %p228, %p229
      %p232 = scmp.ne.s32.totalorder %s217, %s231
      %p233 = scmp.eq.s32.totalorder %s39, 0
      %p234 = por %p232, %p233
      %s236 = sadd.s32 %s235, 1
      %p239 = scmp.eq.s32.totalorder %s33, 1
      %p240 = scmp.ne.s32.totalorder %s235, %s237
      %p241 = scmp.eq.s32.totalorder %s33, 0
      %p242 = por %p240, %p241
      %p243 = scmp.ne.s32.totalorder %s235, %s237
      %p244 = scmp.eq.s32.totalorder %s38, 1
      %p245 = por %p243, %p244
      %p246 = scmp.ne.s32.totalorder %s237, %s238
      %p247 = scmp.eq.s32.totalorder %s38, 0
      %p248 = por %p246, %p247
      %p249 = scmp.ne.s32.totalorder %s237, %s238
      %p250 = scmp.eq.s32.totalorder %s39, 1
      %p251 = por %p249, %p250
      %p253 = scmp.ne.s32.totalorder %s238, %s252
      %p254 = scmp.eq.s32.totalorder %s39, 0
      %p255 = por %p253, %p254
      %s257 = sadd.s32 %s256, 1
      %p260 = scmp.eq.s32.totalorder %s33, 1
      %p261 = scmp.ne.s32.totalorder %s256, %s258
      %p262 = scmp.eq.s32.totalorder %s33, 0
      %p263 = por %p261, %p262
      %p264 = scmp.ne.s32.totalorder %s256, %s258
      %p265 = scmp.eq.s32.totalorder %s38, 1
      %p266 = por %p264, %p265
      %p267 = scmp.ne.s32.totalorder %s258, %s259
      %p268 = scmp.eq.s32.totalorder %s38, 0
      %p269 = por %p267, %p268
      %p270 = scmp.ne.s32.totalorder %s258, %s259
      %p271 = scmp.eq.s32.totalorder %s39, 1
      %p272 = por %p270, %p271
      %p274 = scmp.ne.s32.totalorder %s259, %s273
      %p275 = scmp.eq.s32.totalorder %s39, 0
      %p276 = por %p274, %p275
      %s278 = sadd.s32 %s277, 1
      %p281 = scmp.eq.s32.totalorder %s33, 1
      %p282 = scmp.ne.s32.totalorder %s277, %s279
      %p283 = scmp.eq.s32.totalorder %s33, 0
      %p284 = por %p282, %p283
      %p285 = scmp.ne.s32.totalorder %s277, %s279
      %p286 = scmp.eq.s32.totalorder %s38, 1
      %p287 = por %p285, %p286
      %p288 = scmp.ne.s32.totalorder %s279, %s280
      %p289 = scmp.eq.s32.totalorder %s38, 0
      %p290 = por %p288, %p289
      %p291 = scmp.ne.s32.totalorder %s279, %s280
      %p292 = scmp.eq.s32.totalorder %s39, 1
      %p293 = por %p291, %p292
      %p295 = scmp.ne.s32.totalorder %s280, %s294
      %p296 = scmp.eq.s32.totalorder %s39, 0
      %p297 = por %p295, %p296
      %s299 = sadd.s32 %s298, 1
      %p302 = scmp.eq.s32.totalorder %s33, 1
      %p303 = scmp.ne.s32.totalorder %s298, %s300
      %p304 = scmp.eq.s32.totalorder %s33, 0
      %p305 = por %p303, %p304
      %p306 = scmp.ne.s32.totalorder %s298, %s300
      %p307 = scmp.eq.s32.totalorder %s38, 1
      %p308 = por %p306, %p307
      %p309 = scmp.ne.s32.totalorder %s300, %s301
      %p310 = scmp.eq.s32.totalorder %s38, 0
      %p311 = por %p309, %p310
      %p312 = scmp.ne.s32.totalorder %s300, %s301
      %p313 = scmp.eq.s32.totalorder %s39, 1
      %p314 = por %p312, %p313
      %p316 = scmp.ne.s32.totalorder %s301, %s315
      %p317 = scmp.eq.s32.totalorder %s39, 0
      %p318 = por %p316, %p317
      %s320 = sadd.s32 %s319, 1
      %p323 = scmp.eq.s32.totalorder %s33, 1
      %p324 = scmp.ne.s32.totalorder %s319, %s321
      %p325 = scmp.eq.s32.totalorder %s33, 0
      %p326 = por %p324, %p325
      %p327 = scmp.ne.s32.totalorder %s319, %s321
      %p328 = scmp.eq.s32.totalorder %s38, 1
      %p329 = por %p327, %p328
      %p330 = scmp.ne.s32.totalorder %s321, %s322
      %p331 = scmp.eq.s32.totalorder %s38, 0
      %p332 = por %p330, %p331
      %p333 = scmp.ne.s32.totalorder %s321, %s322
      %p334 = scmp.eq.s32.totalorder %s39, 1
      %p335 = por %p333, %p334
      %p337 = scmp.ne.s32.totalorder %s322, %s336
      %p338 = scmp.eq.s32.totalorder %s39, 0
      %p339 = por %p337, %p338
      %s340 = ssub.s32 %s33, %s40
      %p341 = scmp.eq.s32.totalorder %s340, 0
      %s343 = sadd.s32 %s342, 1
      %s344 = scalar_select %p341, %s342, %s343
      %p347 = pneg %p341
      %p348 = scmp.eq.s32.totalorder %s33, 1
      %p349 = por %p347, %p348
      %p350 = scmp.ne.s32.totalorder %s342, %s345
      %p351 = scmp.eq.s32.totalorder %s33, 0
      %p352 = por %p350, %p351
      %p353 = scmp.ne.s32.totalorder %s342, %s345
      %p354 = scmp.eq.s32.totalorder %s38, 1
      %p355 = por %p353, %p354
      %p356 = scmp.ne.s32.totalorder %s345, %s346
      %p357 = scmp.eq.s32.totalorder %s38, 0
      %p358 = por %p356, %p357
      %p359 = scmp.ne.s32.totalorder %s345, %s346
      %p360 = scmp.eq.s32.totalorder %s39, 1
      %p361 = por %p359, %p360
      %p363 = scmp.ne.s32.totalorder %s346, %s362
      %p364 = scmp.eq.s32.totalorder %s39, 0
      %p365 = por %p363, %p364
      %p366 = scmp.le.s32.totalorder 1, %s33
      %p367 = scmp.lt.s32.totalorder %s33, 3
      %p368 = pnand %p366, %p367
      %p369 = pneg %p368
      // Predicated region
      $region9: #{tpu_custom_call.1} parent=5 // pred_check
        _
      $region10: #{tpu_custom_call.1} parent=5 // pred_check_branch
        %371 = sbr.rel (%p368) target = $region12
      $region11: #{tpu_custom_call.1} parent=5 // pred_region
        %s372 = ssub.s32 %s33, 1
        // Predicated region
        $region13: #{tpu_custom_call.1} parent=11 // pred_check
          %p373 = pneg %p54
        $region14: #{tpu_custom_call.1} parent=11 // pred_check_branch
          %375 = sbr.rel (%p373) target = $region16
        $region15: #{tpu_custom_call.1} parent=11 // pred_region
          %s377 = ssub.s32 64, 64
          %378 = vsyncadd [#allocation5], %s377
          %381 = dma.hbm_to_smem %s0, 64, [#allocation2], [#allocation5]
        $region16: #{tpu_custom_call.1} parent=11 // pred_fallthru
          _
        // Predicated region
        $region17: #{tpu_custom_call.1} parent=11 // pred_check
          %p382 = pneg %p101
        $region18: #{tpu_custom_call.1} parent=11 // pred_check_branch
          %384 = sbr.rel (%p382) target = $region20
        $region19: #{tpu_custom_call.1} parent=11 // pred_region
          %s386 = ssub.s32 512, 512
          %387 = vsyncadd [#allocation8], %s386
          %s388 = sshll.u32 [#allocation7], 4
          %s389 = int_to_ptr.vmem [resolvable:$true] %s388
          %394 = dma.hbm_to_vmem [thread:$0]  %s2, 512, %s389, [#allocation8], 128, 128, 8
        $region20: #{tpu_custom_call.1} parent=11 // pred_fallthru
          _
        // Predicated region
        $region21: #{tpu_custom_call.1} parent=11 // pred_check
          %p395 = pneg %p122
        $region22: #{tpu_custom_call.1} parent=11 // pred_check_branch
          %397 = sbr.rel (%p395) target = $region24
        $region23: #{tpu_custom_call.1} parent=11 // pred_region
          %s399 = ssub.s32 512, 512
          %400 = vsyncadd [#allocation8], %s399
          %s401 = sshll.u32 [#allocation9], 4
          %s402 = int_to_ptr.vmem [resolvable:$true] %s401
          %407 = dma.hbm_to_vmem [thread:$0]  %s3, 512, %s402, [#allocation8], 128, 128, 8
        $region24: #{tpu_custom_call.1} parent=11 // pred_fallthru
          _
        // Predicated region
        $region25: #{tpu_custom_call.1} parent=11 // pred_check
          %p408 = pneg %p143
        $region26: #{tpu_custom_call.1} parent=11 // pred_check_branch
          %410 = sbr.rel (%p408) target = $region28
        $region27: #{tpu_custom_call.1} parent=11 // pred_region
          %s412 = ssub.s32 512, 512
          %413 = vsyncadd [#allocation11], %s412
          %s414 = sshll.u32 [#allocation10], 4
          %s415 = int_to_ptr.vmem [resolvable:$true] %s414
          %420 = dma.hbm_to_vmem [thread:$0]  %s4, 512, %s415, [#allocation11], 128, 128, 8
        $region28: #{tpu_custom_call.1} parent=11 // pred_fallthru
          _
        // Predicated region
        $region29: #{tpu_custom_call.1} parent=11 // pred_check
          %p421 = pneg %p164
        $region30: #{tpu_custom_call.1} parent=11 // pred_check_branch
          %423 = sbr.rel (%p421) target = $region32
        $region31: #{tpu_custom_call.1} parent=11 // pred_region
          %s425 = ssub.s32 512, 512
          %426 = vsyncadd [#allocation11], %s425
          %s427 = sshll.u32 [#allocation12], 4
          %s428 = int_to_ptr.vmem [resolvable:$true] %s427
          %433 = dma.hbm_to_vmem [thread:$0]  %s5, 512, %s428, [#allocation11], 128, 128, 8
        $region32: #{tpu_custom_call.1} parent=11 // pred_fallthru
          _
        // Predicated region
        $region33: #{tpu_custom_call.1} parent=11 // pred_check
          %p434 = pneg %p185
        $region34: #{tpu_custom_call.1} parent=11 // pred_check_branch
          %436 = sbr.rel (%p434) target = $region36
        $region35: #{tpu_custom_call.1} parent=11 // pred_region
          %s438 = ssub.s32 512, 512
          %439 = vsyncadd [#allocation14], %s438
          %s440 = sshll.u32 [#allocation13], 4
          %s441 = int_to_ptr.vmem [resolvable:$true] %s440
          %446 = dma.hbm_to_vmem [thread:$0]  %s6, 512, %s441, [#allocation14], 128, 128, 8
        $region36: #{tpu_custom_call.1} parent=11 // pred_fallthru
          _
        // Predicated region
        $region37: #{tpu_custom_call.1} parent=11 // pred_check
          %p447 = pneg %p206
        $region38: #{tpu_custom_call.1} parent=11 // pred_check_branch
          %449 = sbr.rel (%p447) target = $region40
        $region39: #{tpu_custom_call.1} parent=11 // pred_region
          %s451 = ssub.s32 512, 512
          %452 = vsyncadd [#allocation14], %s451
          %s453 = sshll.u32 [#allocation15], 4
          %s454 = int_to_ptr.vmem [resolvable:$true] %s453
          %459 = dma.hbm_to_vmem [thread:$0]  %s7, 512, %s454, [#allocation14], 128, 128, 8
        $region40: #{tpu_custom_call.1} parent=11 // pred_fallthru
          _
        // Predicated region
        $region41: #{tpu_custom_call.1} parent=11 // pred_check
          %p460 = pneg %p227
        $region42: #{tpu_custom_call.1} parent=11 // pred_check_branch
          %462 = sbr.rel (%p460) target = $region44
        $region43: #{tpu_custom_call.1} parent=11 // pred_region
          %s464 = ssub.s32 512, 512
          %465 = vsyncadd [#allocation17], %s464
          %s466 = sshll.u32 [#allocation16], 4
          %s467 = int_to_ptr.vmem [resolvable:$true] %s466
          %472 = dma.hbm_to_vmem [thread:$0]  %s8, 512, %s467, [#allocation17], 128, 128, 8
        $region44: #{tpu_custom_call.1} parent=11 // pred_fallthru
          _
        // Predicated region
        $region45: #{tpu_custom_call.1} parent=11 // pred_check
          %p473 = pneg %p248
        $region46: #{tpu_custom_call.1} parent=11 // pred_check_branch
          %475 = sbr.rel (%p473) target = $region48
        $region47: #{tpu_custom_call.1} parent=11 // pred_region
          %s477 = ssub.s32 512, 512
          %478 = vsyncadd [#allocation17], %s477
          %s479 = sshll.u32 [#allocation18], 4
          %s480 = int_to_ptr.vmem [resolvable:$true] %s479
          %485 = dma.hbm_to_vmem [thread:$0]  %s9, 512, %s480, [#allocation17], 128, 128, 8
        $region48: #{tpu_custom_call.1} parent=11 // pred_fallthru
          _
        // Predicated region
        $region49: #{tpu_custom_call.1} parent=11 // pred_check
          %p486 = pneg %p269
        $region50: #{tpu_custom_call.1} parent=11 // pred_check_branch
          %488 = sbr.rel (%p486) target = $region52
        $region51: #{tpu_custom_call.1} parent=11 // pred_region
          %s490 = ssub.s32 512, 512
          %491 = vsyncadd [#allocation20], %s490
          %s492 = sshll.u32 [#allocation19], 4
          %s493 = int_to_ptr.vmem [resolvable:$true] %s492
          %498 = dma.hbm_to_vmem [thread:$0]  %s10, 512, %s493, [#allocation20], 128, 128, 8
        $region52: #{tpu_custom_call.1} parent=11 // pred_fallthru
          _
        // Predicated region
        $region53: #{tpu_custom_call.1} parent=11 // pred_check
          %p499 = pneg %p290
        $region54: #{tpu_custom_call.1} parent=11 // pred_check_branch
          %501 = sbr.rel (%p499) target = $region56
        $region55: #{tpu_custom_call.1} parent=11 // pred_region
          %s503 = ssub.s32 512, 512
          %504 = vsyncadd [#allocation20], %s503
          %s505 = sshll.u32 [#allocation21], 4
          %s506 = int_to_ptr.vmem [resolvable:$true] %s505
          %511 = dma.hbm_to_vmem [thread:$0]  %s11, 512, %s506, [#allocation20], 128, 128, 8
        $region56: #{tpu_custom_call.1} parent=11 // pred_fallthru
          _
        // Predicated region
        $region57: #{tpu_custom_call.1} parent=11 // pred_check
          %p512 = pneg %p311
        $region58: #{tpu_custom_call.1} parent=11 // pred_check_branch
          %514 = sbr.rel (%p512) target = $region60
        $region59: #{tpu_custom_call.1} parent=11 // pred_region
          %s516 = ssub.s32 512, 512
          %517 = vsyncadd [#allocation23], %s516
          %s518 = sshll.u32 [#allocation22], 4
          %s519 = int_to_ptr.vmem [resolvable:$true] %s518
          %524 = dma.hbm_to_vmem [thread:$0]  %s12, 512, %s519, [#allocation23], 128, 128, 8
        $region60: #{tpu_custom_call.1} parent=11 // pred_fallthru
          _
        // Predicated region
        $region61: #{tpu_custom_call.1} parent=11 // pred_check
          %p525 = pneg %p332
        $region62: #{tpu_custom_call.1} parent=11 // pred_check_branch
          %527 = sbr.rel (%p525) target = $region64
        $region63: #{tpu_custom_call.1} parent=11 // pred_region
          %s529 = ssub.s32 512, 512
          %530 = vsyncadd [#allocation23], %s529
          %s531 = sshll.u32 [#allocation24], 4
          %s532 = int_to_ptr.vmem [resolvable:$true] %s531
          %537 = dma.hbm_to_vmem [thread:$0]  %s13, 512, %s532, [#allocation23], 128, 128, 8
        $region64: #{tpu_custom_call.1} parent=11 // pred_fallthru
          _
      $region12: #{tpu_custom_call.1} parent=5 // pred_fallthru
        _
      %p538 = scmp.lt.s32.totalorder %s33, 2
      // Predicated region
      $region65: #{tpu_custom_call.1} parent=5 // pred_check
        %p539 = pneg %p538
      $region66: #{tpu_custom_call.1} parent=5 // pred_check_branch
        %541 = sbr.rel (%p539) target = $region68
      $region67: #{tpu_custom_call.1} parent=5 // pred_region
        // Predicated region
        $region69: #{tpu_custom_call.1} parent=67 // pred_check
          %p542 = pneg %p74
        $region70: #{tpu_custom_call.1} parent=67 // pred_check_branch
          %544 = sbr.rel (%p542) target = $region72
        $region71: #{tpu_custom_call.1} parent=67 // pred_region
          %s545 = sand.u32 %s64, 1
          %s546 = scalar_lea.sflag [#allocation3], %s545
          %s547 = sand.u32 %s64, 1
          %s548 = smul.addr %s547, 32
          %s549 = scalar_lea.vmem [#allocation6], %s548
          %s551 = ssub.s32 512, 512
          %552 = vsyncadd %s546, %s551
          %s553 = smul.addr %s33, 4
          %s554 = smul.addr %s553, 128
          %s555 = scalar_lea.hbm %s1, %s554
          %s556 = sshll.u32 %s549, 4
          %s557 = int_to_ptr.vmem [resolvable:$true] %s556
          %562 = dma.hbm_to_vmem [thread:$0]  %s555, 512, %s557, %s546, 128, 128, 8
        $region72: #{tpu_custom_call.1} parent=67 // pred_fallthru
          _
      $region68: #{tpu_custom_call.1} parent=5 // pred_fallthru
        _
      %p563 = scmp.le.s32.totalorder 1, %s33
      %p564 = scmp.lt.s32.totalorder %s33, 3
      %p565 = pnand %p563, %p564
      %p566 = pneg %p565
      // Predicated region
      $region73: #{tpu_custom_call.1} parent=5 // pred_check
        _
      $region74: #{tpu_custom_call.1} parent=5 // pred_check_branch
        %568 = sbr.rel (%p565) target = $region76
      $region75: #{tpu_custom_call.1} parent=5 // pred_region
        %s569 = ssub.s32 %s33, 1
        // Predicated region
        $region77: #{tpu_custom_call.1} parent=75 // pred_check
          %p570 = pneg %p54
        $region78: #{tpu_custom_call.1} parent=75 // pred_check_branch
          %572 = sbr.rel (%p570) target = $region80
        $region79: #{tpu_custom_call.1} parent=75 // pred_region
          %573 = dma.done [#allocation5], 64
        $region80: #{tpu_custom_call.1} parent=75 // pred_fallthru
          _
        %s574 = sand.u32 %s67, 1
        %s575 = scalar_lea.sflag [#allocation3], %s574
        %s576 = sand.u32 %s67, 1
        %s577 = smul.addr %s576, 32
        %s578 = scalar_lea.vmem [#allocation6], %s577
        // Predicated region
        $region81: #{tpu_custom_call.1} parent=75 // pred_check
          %p579 = pneg %p80
        $region82: #{tpu_custom_call.1} parent=75 // pred_check_branch
          %581 = sbr.rel (%p579) target = $region84
        $region83: #{tpu_custom_call.1} parent=75 // pred_region
          %582 = dma.done %s575, 512
        $region84: #{tpu_custom_call.1} parent=75 // pred_fallthru
          _
        // Predicated region
        $region85: #{tpu_custom_call.1} parent=75 // pred_check
          %p583 = pneg %p101
        $region86: #{tpu_custom_call.1} parent=75 // pred_check_branch
          %585 = sbr.rel (%p583) target = $region88
        $region87: #{tpu_custom_call.1} parent=75 // pred_region
          %586 = dma.done [#allocation8], 512
        $region88: #{tpu_custom_call.1} parent=75 // pred_fallthru
          _
        // Predicated region
        $region89: #{tpu_custom_call.1} parent=75 // pred_check
          %p587 = pneg %p122
        $region90: #{tpu_custom_call.1} parent=75 // pred_check_branch
          %589 = sbr.rel (%p587) target = $region92
        $region91: #{tpu_custom_call.1} parent=75 // pred_region
          %590 = dma.done [#allocation8], 512
        $region92: #{tpu_custom_call.1} parent=75 // pred_fallthru
          _
        // Predicated region
        $region93: #{tpu_custom_call.1} parent=75 // pred_check
          %p591 = pneg %p143
        $region94: #{tpu_custom_call.1} parent=75 // pred_check_branch
          %593 = sbr.rel (%p591) target = $region96
        $region95: #{tpu_custom_call.1} parent=75 // pred_region
          %594 = dma.done [#allocation11], 512
        $region96: #{tpu_custom_call.1} parent=75 // pred_fallthru
          _
        // Predicated region
        $region97: #{tpu_custom_call.1} parent=75 // pred_check
          %p595 = pneg %p164
        $region98: #{tpu_custom_call.1} parent=75 // pred_check_branch
          %597 = sbr.rel (%p595) target = $region100
        $region99: #{tpu_custom_call.1} parent=75 // pred_region
          %598 = dma.done [#allocation11], 512
        $region100: #{tpu_custom_call.1} parent=75 // pred_fallthru
          _
        // Predicated region
        $region101: #{tpu_custom_call.1} parent=75 // pred_check
          %p599 = pneg %p185
        $region102: #{tpu_custom_call.1} parent=75 // pred_check_branch
          %601 = sbr.rel (%p599) target = $region104
        $region103: #{tpu_custom_call.1} parent=75 // pred_region
          %602 = dma.done [#allocation14], 512
        $region104: #{tpu_custom_call.1} parent=75 // pred_fallthru
          _
        // Predicated region
        $region105: #{tpu_custom_call.1} parent=75 // pred_check
          %p603 = pneg %p206
        $region106: #{tpu_custom_call.1} parent=75 // pred_check_branch
          %605 = sbr.rel (%p603) target = $region108
        $region107: #{tpu_custom_call.1} parent=75 // pred_region
          %606 = dma.done [#allocation14], 512
        $region108: #{tpu_custom_call.1} parent=75 // pred_fallthru
          _
        // Predicated region
        $region109: #{tpu_custom_call.1} parent=75 // pred_check
          %p607 = pneg %p227
        $region110: #{tpu_custom_call.1} parent=75 // pred_check_branch
          %609 = sbr.rel (%p607) target = $region112
        $region111: #{tpu_custom_call.1} parent=75 // pred_region
          %610 = dma.done [#allocation17], 512
        $region112: #{tpu_custom_call.1} parent=75 // pred_fallthru
          _
        // Predicated region
        $region113: #{tpu_custom_call.1} parent=75 // pred_check
          %p611 = pneg %p248
        $region114: #{tpu_custom_call.1} parent=75 // pred_check_branch
          %613 = sbr.rel (%p611) target = $region116
        $region115: #{tpu_custom_call.1} parent=75 // pred_region
          %614 = dma.done [#allocation17], 512
        $region116: #{tpu_custom_call.1} parent=75 // pred_fallthru
          _
        // Predicated region
        $region117: #{tpu_custom_call.1} parent=75 // pred_check
          %p615 = pneg %p269
        $region118: #{tpu_custom_call.1} parent=75 // pred_check_branch
          %617 = sbr.rel (%p615) target = $region120
        $region119: #{tpu_custom_call.1} parent=75 // pred_region
          %618 = dma.done [#allocation20], 512
        $region120: #{tpu_custom_call.1} parent=75 // pred_fallthru
          _
        // Predicated region
        $region121: #{tpu_custom_call.1} parent=75 // pred_check
          %p619 = pneg %p290
        $region122: #{tpu_custom_call.1} parent=75 // pred_check_branch
          %621 = sbr.rel (%p619) target = $region124
        $region123: #{tpu_custom_call.1} parent=75 // pred_region
          %622 = dma.done [#allocation20], 512
        $region124: #{tpu_custom_call.1} parent=75 // pred_fallthru
          _
        // Predicated region
        $region125: #{tpu_custom_call.1} parent=75 // pred_check
          %p623 = pneg %p311
        $region126: #{tpu_custom_call.1} parent=75 // pred_check_branch
          %625 = sbr.rel (%p623) target = $region128
        $region127: #{tpu_custom_call.1} parent=75 // pred_region
          %626 = dma.done [#allocation23], 512
        $region128: #{tpu_custom_call.1} parent=75 // pred_fallthru
          _
        // Predicated region
        $region129: #{tpu_custom_call.1} parent=75 // pred_check
          %p627 = pneg %p332
        $region130: #{tpu_custom_call.1} parent=75 // pred_check_branch
          %629 = sbr.rel (%p627) target = $region132
        $region131: #{tpu_custom_call.1} parent=75 // pred_region
          %630 = dma.done [#allocation23], 512
        $region132: #{tpu_custom_call.1} parent=75 // pred_fallthru
          _
        %631 = sfence
        %p632 = pneg %p54
        %p633 = pneg %p51
        %s634 = sand.u32 %s67, 1
        %s635 = scalar_lea.sflag [#allocation3], %s634
        %s636 = sand.u32 %s67, 1
        %s637 = smul.addr %s636, 32
        %s638 = scalar_lea.vmem [#allocation6], %s637
        %p639 = pneg %p80
        %p640 = pneg %p77
        %p641 = pneg %p101
        %p642 = pneg %p98
        %p643 = pneg %p122
        %p644 = pneg %p119
        %p645 = pneg %p143
        %p646 = pneg %p140
        %p647 = pneg %p164
        %p648 = pneg %p161
        %p649 = pneg %p185
        %p650 = pneg %p182
        %p651 = pneg %p206
        %p652 = pneg %p203
        %p653 = pneg %p227
        %p654 = pneg %p224
        %p655 = pneg %p248
        %p656 = pneg %p245
        %p657 = pneg %p269
        %p658 = pneg %p266
        %p659 = pneg %p290
        %p660 = pneg %p287
        %p661 = pneg %p311
        %p662 = pneg %p308
        %p663 = pneg %p332
        %p664 = pneg %p329
        %p665 = pneg %p358
        %p666 = pneg %p355
        %s667 = sand.u32 %s345, 1
        %s668 = scalar_lea.sflag [#allocation4], %s667
        %s669 = sand.u32 %s345, 1
        %s670 = smul.addr %s669, 96
        %s671 = scalar_lea.vmem [#allocation25], %s670
        %v672 = vld [vmem:[%s578] sm:$0xff]
        %v673 = vld [vmem:[%s578 + $0x8] sm:$0xff]
        %v674 = vld [vmem:[%s578 + $0x10] sm:$0xff]
        %v675 = vld [vmem:[%s578 + $0x18] sm:$0xff]
        %v676 = vld [vmem:[#allocation7] sm:$0xff]
        %v677 = vld [vmem:[#allocation7 + $0x8] sm:$0xff]
        %v678 = vld [vmem:[#allocation7 + $0x10] sm:$0xff]
        %v679 = vld [vmem:[#allocation7 + $0x18] sm:$0xff]
        %vm680 = vcmask 261120
        %v682 = vsel %vm680, %v676, 0
        %v685 = vsel %vm680, %v677, 0
        %v688 = vsel %vm680, %v678, 0
        %v691 = vsel %vm680, %v679, 0
        %693 = vmatprep.subr.mxu0 0.0
        %694 = vmatpush1.msra.mxu0 0.0
        %695 = vmatprep.subr.mxu0 0.0
        %696 = vmatpush1.msra.mxu0 0.0
        %697 = vmatprep.subr.mxu0 0.0
        %698 = vmatpush1.msra.mxu0 0.0
        %699 = vmatprep.subr.mxu0 0.0
        %700 = vmatpush1.msra.mxu0 0.0
        %701 = vmatprep.subr.mxu0 0.0
        %702 = vmatpush1.msra.mxu0 0.0
        %703 = vmatprep.subr.mxu0 0.0
        %704 = vmatpush1.msra.mxu0 0.0
        %705 = vmatprep.subr.mxu0 0.0
        %706 = vmatpush1.msra.mxu0 0.0
        %707 = vmatprep.subr.mxu0 0.0
        %708 = vmatpush1.msra.mxu0 0.0
        %709 = vmatprep.subr.mxu0 0.0
        %710 = vmatpush1.msra.mxu0 0.0
        %711 = vmatprep.subr.mxu0 0.0
        %712 = vmatpush1.msra.mxu0 0.0
        %713 = vmatprep.subr.mxu0 0.0
        %714 = vmatpush1.msra.mxu0 0.0
        %715 = vmatprep.subr.mxu0 0.0
        %716 = vmatpush1.msra.mxu0 0.0
        %717 = vmatprep.subr.mxu0 0.0
        %718 = vmatpush1.msra.mxu0 %v675
        %719 = vmatprep.subr.mxu0 0.0
        %720 = vmatpush1.msra.mxu0 %v674
        %721 = vmatprep.subr.mxu0 0.0
        %722 = vmatpush1.msra.mxu0 %v673
        %723 = vmatprep.subr.mxu0 0.0
        %724 = vmatpush1.msra.mxu0 %v672
        %725 = vmatprep.subr.mxu0 0.0
        %726 = vmatpush2.msra.mxu0 0.0
        %727 = vmatprep.subr.mxu0 0.0
        %728 = vmatpush2.msra.mxu0 0.0
        %729 = vmatprep.subr.mxu0 0.0
        %730 = vmatpush2.msra.mxu0 0.0
        %731 = vmatprep.subr.mxu0 0.0
        %732 = vmatpush2.msra.mxu0 0.0
        %733 = vmatprep.subr.mxu0 0.0
        %734 = vmatpush2.msra.mxu0 0.0
        %735 = vmatprep.subr.mxu0 0.0
        %736 = vmatpush2.msra.mxu0 0.0
        %737 = vmatprep.subr.mxu0 0.0
        %738 = vmatpush2.msra.mxu0 0.0
        %739 = vmatprep.subr.mxu0 0.0
        %740 = vmatpush2.msra.mxu0 0.0
        %741 = vmatprep.subr.mxu0 0.0
        %742 = vmatpush2.msra.mxu0 0.0
        %743 = vmatprep.subr.mxu0 0.0
        %744 = vmatpush2.msra.mxu0 0.0
        %745 = vmatprep.subr.mxu0 0.0
        %746 = vmatpush2.msra.mxu0 0.0
        %747 = vmatprep.subr.mxu0 0.0
        %748 = vmatpush2.msra.mxu0 0.0
        %749 = vmatprep.subr.mxu0 0.0
        %750 = vmatpush2.msra.mxu0 0.0
        %751 = vmatprep.subr.mxu0 0.0
        %752 = vmatpush2.msra.mxu0 0.0
        %753 = vmatprep.subr.mxu0 0.0
        %754 = vmatpush2.msra.mxu0 0.0
        %755 = vmatprep.subr.mxu0 0.0
        %756 = vmatpush2.msra.mxu0 0.0
        %757 = vmatprep.mubr.f32.mxu0 0.0
        %758 = vmatmul.mubr.f32.gmra.mxu0 %v682
        %v759 = vpop.f32.mrf.mxu0
        %v760 = vadd.f32 0.0, %v759
        %v761 = vpop.f32.mrf.mxu0
        %762 = vmatprep.mubr.f32.mxu0 0.0
        %763 = vmatmul.mubr.f32.gmra.mxu0 %v685
        %v764 = vpop.f32.mrf.mxu0
        %v765 = vadd.f32 0.0, %v764
        %v766 = vpop.f32.mrf.mxu0
        %767 = vmatprep.mubr.f32.mxu0 0.0
        %768 = vmatmul.mubr.f32.gmra.mxu0 %v688
        %v769 = vpop.f32.mrf.mxu0
        %v770 = vadd.f32 0.0, %v769
        %v771 = vpop.f32.mrf.mxu0
        %772 = vmatprep.mubr.f32.mxu0 0.0
        %773 = vmatmul.mubr.f32.gmra.mxu0 %v691
        %v774 = vpop.f32.mrf.mxu0
        %v775 = vadd.f32 0.0, %v774
        %v776 = vpop.f32.mrf.mxu0
        %777 = vdwg.mxu0
        %v778 = vld [vmem:[#allocation9] sm:$0xff]
        %v779 = vld [vmem:[#allocation9 + $0x8] sm:$0xff]
        %v780 = vld [vmem:[#allocation9 + $0x10] sm:$0xff]
        %v781 = vld [vmem:[#allocation9 + $0x18] sm:$0xff]
        %v783 = vsel %vm680, %v778, 0
        %v786 = vsel %vm680, %v779, 0
        %v789 = vsel %vm680, %v780, 0
        %v792 = vsel %vm680, %v781, 0
        %794 = vmatprep.subr.mxu0 0.0
        %795 = vmatpush1.msra.mxu0 0.0
        %796 = vmatprep.subr.mxu0 0.0
        %797 = vmatpush1.msra.mxu0 0.0
        %798 = vmatprep.subr.mxu0 0.0
        %799 = vmatpush1.msra.mxu0 0.0
        %800 = vmatprep.subr.mxu0 0.0
        %801 = vmatpush1.msra.mxu0 0.0
        %802 = vmatprep.subr.mxu0 0.0
        %803 = vmatpush1.msra.mxu0 0.0
        %804 = vmatprep.subr.mxu0 0.0
        %805 = vmatpush1.msra.mxu0 0.0
        %806 = vmatprep.subr.mxu0 0.0
        %807 = vmatpush1.msra.mxu0 0.0
        %808 = vmatprep.subr.mxu0 0.0
        %809 = vmatpush1.msra.mxu0 0.0
        %810 = vmatprep.subr.mxu0 0.0
        %811 = vmatpush1.msra.mxu0 0.0
        %812 = vmatprep.subr.mxu0 0.0
        %813 = vmatpush1.msra.mxu0 0.0
        %814 = vmatprep.subr.mxu0 0.0
        %815 = vmatpush1.msra.mxu0 0.0
        %816 = vmatprep.subr.mxu0 0.0
        %817 = vmatpush1.msra.mxu0 0.0
        %818 = vmatprep.subr.mxu0 0.0
        %819 = vmatpush1.msra.mxu0 %v675
        %820 = vmatprep.subr.mxu0 0.0
        %821 = vmatpush1.msra.mxu0 %v674
        %822 = vmatprep.subr.mxu0 0.0
        %823 = vmatpush1.msra.mxu0 %v673
        %824 = vmatprep.subr.mxu0 0.0
        %825 = vmatpush1.msra.mxu0 %v672
        %826 = vmatprep.subr.mxu0 0.0
        %827 = vmatpush2.msra.mxu0 0.0
        %828 = vmatprep.subr.mxu0 0.0
        %829 = vmatpush2.msra.mxu0 0.0
        %830 = vmatprep.subr.mxu0 0.0
        %831 = vmatpush2.msra.mxu0 0.0
        %832 = vmatprep.subr.mxu0 0.0
        %833 = vmatpush2.msra.mxu0 0.0
        %834 = vmatprep.subr.mxu0 0.0
        %835 = vmatpush2.msra.mxu0 0.0
        %836 = vmatprep.subr.mxu0 0.0
        %837 = vmatpush2.msra.mxu0 0.0
        %838 = vmatprep.subr.mxu0 0.0
        %839 = vmatpush2.msra.mxu0 0.0
        %840 = vmatprep.subr.mxu0 0.0
        %841 = vmatpush2.msra.mxu0 0.0
        %842 = vmatprep.subr.mxu0 0.0
        %843 = vmatpush2.msra.mxu0 0.0
        %844 = vmatprep.subr.mxu0 0.0
        %845 = vmatpush2.msra.mxu0 0.0
        %846 = vmatprep.subr.mxu0 0.0
        %847 = vmatpush2.msra.mxu0 0.0
        %848 = vmatprep.subr.mxu0 0.0
        %849 = vmatpush2.msra.mxu0 0.0
        %850 = vmatprep.subr.mxu0 0.0
        %851 = vmatpush2.msra.mxu0 0.0
        %852 = vmatprep.subr.mxu0 0.0
        %853 = vmatpush2.msra.mxu0 0.0
        %854 = vmatprep.subr.mxu0 0.0
        %855 = vmatpush2.msra.mxu0 0.0
        %856 = vmatprep.subr.mxu0 0.0
        %857 = vmatpush2.msra.mxu0 0.0
        %858 = vmatprep.mubr.f32.mxu0 0.0
        %859 = vmatmul.mubr.f32.gmra.mxu0 %v783
        %v860 = vpop.f32.mrf.mxu0
        %v861 = vadd.f32 0.0, %v860
        %v862 = vpop.f32.mrf.mxu0
        %863 = vmatprep.mubr.f32.mxu0 0.0
        %864 = vmatmul.mubr.f32.gmra.mxu0 %v786
        %v865 = vpop.f32.mrf.mxu0
        %v866 = vadd.f32 0.0, %v865
        %v867 = vpop.f32.mrf.mxu0
        %868 = vmatprep.mubr.f32.mxu0 0.0
        %869 = vmatmul.mubr.f32.gmra.mxu0 %v789
        %v870 = vpop.f32.mrf.mxu0
        %v871 = vadd.f32 0.0, %v870
        %v872 = vpop.f32.mrf.mxu0
        %873 = vmatprep.mubr.f32.mxu0 0.0
        %874 = vmatmul.mubr.f32.gmra.mxu0 %v792
        %v875 = vpop.f32.mrf.mxu0
        %v876 = vadd.f32 0.0, %v875
        %v877 = vpop.f32.mrf.mxu0
        %878 = vdwg.mxu0
        %v879 = vld [vmem:[#allocation10] sm:$0xff]
        %v880 = vld [vmem:[#allocation10 + $0x8] sm:$0xff]
        %v881 = vld [vmem:[#allocation10 + $0x10] sm:$0xff]
        %v882 = vld [vmem:[#allocation10 + $0x18] sm:$0xff]
        %v884 = vsel %vm680, %v760, 0
        %v887 = vsel %vm680, %v765, 0
        %v890 = vsel %vm680, %v770, 0
        %v893 = vsel %vm680, %v775, 0
        %895 = vmatprep.subr.mxu0 0.0
        %896 = vmatpush1.msra.mxu0 0.0
        %897 = vmatprep.subr.mxu0 0.0
        %898 = vmatpush1.msra.mxu0 0.0
        %899 = vmatprep.subr.mxu0 0.0
        %900 = vmatpush1.msra.mxu0 0.0
        %901 = vmatprep.subr.mxu0 0.0
        %902 = vmatpush1.msra.mxu0 0.0
        %903 = vmatprep.subr.mxu0 0.0
        %904 = vmatpush1.msra.mxu0 0.0
        %905 = vmatprep.subr.mxu0 0.0
        %906 = vmatpush1.msra.mxu0 0.0
        %907 = vmatprep.subr.mxu0 0.0
        %908 = vmatpush1.msra.mxu0 0.0
        %909 = vmatprep.subr.mxu0 0.0
        %910 = vmatpush1.msra.mxu0 0.0
        %911 = vmatprep.subr.mxu0 0.0
        %912 = vmatpush1.msra.mxu0 0.0
        %913 = vmatprep.subr.mxu0 0.0
        %914 = vmatpush1.msra.mxu0 0.0
        %915 = vmatprep.subr.mxu0 0.0
        %916 = vmatpush1.msra.mxu0 0.0
        %917 = vmatprep.subr.mxu0 0.0
        %918 = vmatpush1.msra.mxu0 0.0
        %919 = vmatprep.subr.mxu0 0.0
        %920 = vmatpush1.msra.mxu0 %v882
        %921 = vmatprep.subr.mxu0 0.0
        %922 = vmatpush1.msra.mxu0 %v881
        %923 = vmatprep.subr.mxu0 0.0
        %924 = vmatpush1.msra.mxu0 %v880
        %925 = vmatprep.subr.mxu0 0.0
        %926 = vmatpush1.msra.mxu0 %v879
        %927 = vmatprep.subr.mxu0 0.0
        %928 = vmatpush2.msra.mxu0 0.0
        %929 = vmatprep.subr.mxu0 0.0
        %930 = vmatpush2.msra.mxu0 0.0
        %931 = vmatprep.subr.mxu0 0.0
        %932 = vmatpush2.msra.mxu0 0.0
        %933 = vmatprep.subr.mxu0 0.0
        %934 = vmatpush2.msra.mxu0 0.0
        %935 = vmatprep.subr.mxu0 0.0
        %936 = vmatpush2.msra.mxu0 0.0
        %937 = vmatprep.subr.mxu0 0.0
        %938 = vmatpush2.msra.mxu0 0.0
        %939 = vmatprep.subr.mxu0 0.0
        %940 = vmatpush2.msra.mxu0 0.0
        %941 = vmatprep.subr.mxu0 0.0
        %942 = vmatpush2.msra.mxu0 0.0
        %943 = vmatprep.subr.mxu0 0.0
        %944 = vmatpush2.msra.mxu0 0.0
        %945 = vmatprep.subr.mxu0 0.0
        %946 = vmatpush2.msra.mxu0 0.0
        %947 = vmatprep.subr.mxu0 0.0
        %948 = vmatpush2.msra.mxu0 0.0
        %949 = vmatprep.subr.mxu0 0.0
        %950 = vmatpush2.msra.mxu0 0.0
        %951 = vmatprep.subr.mxu0 0.0
        %952 = vmatpush2.msra.mxu0 0.0
        %953 = vmatprep.subr.mxu0 0.0
        %954 = vmatpush2.msra.mxu0 0.0
        %955 = vmatprep.subr.mxu0 0.0
        %956 = vmatpush2.msra.mxu0 0.0
        %957 = vmatprep.subr.mxu0 0.0
        %958 = vmatpush2.msra.mxu0 0.0
        %959 = vmatprep.mubr.f32.mxu0 0.0
        %960 = vmatmul.mubr.f32.gmra.mxu0 %v884
        %v961 = vpop.f32.mrf.mxu0
        %v962 = vadd.f32 0.0, %v961
        %v963 = vpop.f32.mrf.mxu0
        %964 = vmatprep.mubr.f32.mxu0 0.0
        %965 = vmatmul.mubr.f32.gmra.mxu0 %v887
        %v966 = vpop.f32.mrf.mxu0
        %v967 = vadd.f32 0.0, %v966
        %v968 = vpop.f32.mrf.mxu0
        %969 = vmatprep.mubr.f32.mxu0 0.0
        %970 = vmatmul.mubr.f32.gmra.mxu0 %v890
        %v971 = vpop.f32.mrf.mxu0
        %v972 = vadd.f32 0.0, %v971
        %v973 = vpop.f32.mrf.mxu0
        %974 = vmatprep.mubr.f32.mxu0 0.0
        %975 = vmatmul.mubr.f32.gmra.mxu0 %v893
        %v976 = vpop.f32.mrf.mxu0
        %v977 = vadd.f32 0.0, %v976
        %v978 = vpop.f32.mrf.mxu0
        %979 = vdwg.mxu0
        %v980 = vld [vmem:[#allocation12] sm:$0xff]
        %v981 = vld [vmem:[#allocation12 + $0x8] sm:$0xff]
        %v982 = vld [vmem:[#allocation12 + $0x10] sm:$0xff]
        %v983 = vld [vmem:[#allocation12 + $0x18] sm:$0xff]
        %v985 = vsel %vm680, %v861, 0
        %v988 = vsel %vm680, %v866, 0
        %v991 = vsel %vm680, %v871, 0
        %v994 = vsel %vm680, %v876, 0
        %996 = vmatprep.subr.mxu0 0.0
        %997 = vmatpush1.msra.mxu0 0.0
        %998 = vmatprep.subr.mxu0 0.0
        %999 = vmatpush1.msra.mxu0 0.0
        %1000 = vmatprep.subr.mxu0 0.0
        %1001 = vmatpush1.msra.mxu0 0.0
        %1002 = vmatprep.subr.mxu0 0.0
        %1003 = vmatpush1.msra.mxu0 0.0
        %1004 = vmatprep.subr.mxu0 0.0
        %1005 = vmatpush1.msra.mxu0 0.0
        %1006 = vmatprep.subr.mxu0 0.0
        %1007 = vmatpush1.msra.mxu0 0.0
        %1008 = vmatprep.subr.mxu0 0.0
        %1009 = vmatpush1.msra.mxu0 0.0
        %1010 = vmatprep.subr.mxu0 0.0
        %1011 = vmatpush1.msra.mxu0 0.0
        %1012 = vmatprep.subr.mxu0 0.0
        %1013 = vmatpush1.msra.mxu0 0.0
        %1014 = vmatprep.subr.mxu0 0.0
        %1015 = vmatpush1.msra.mxu0 0.0
        %1016 = vmatprep.subr.mxu0 0.0
        %1017 = vmatpush1.msra.mxu0 0.0
        %1018 = vmatprep.subr.mxu0 0.0
        %1019 = vmatpush1.msra.mxu0 0.0
        %1020 = vmatprep.subr.mxu0 0.0
        %1021 = vmatpush1.msra.mxu0 %v983
        %1022 = vmatprep.subr.mxu0 0.0
        %1023 = vmatpush1.msra.mxu0 %v982
        %1024 = vmatprep.subr.mxu0 0.0
        %1025 = vmatpush1.msra.mxu0 %v981
        %1026 = vmatprep.subr.mxu0 0.0
        %1027 = vmatpush1.msra.mxu0 %v980
        %1028 = vmatprep.subr.mxu0 0.0
        %1029 = vmatpush2.msra.mxu0 0.0
        %1030 = vmatprep.subr.mxu0 0.0
        %1031 = vmatpush2.msra.mxu0 0.0
        %1032 = vmatprep.subr.mxu0 0.0
        %1033 = vmatpush2.msra.mxu0 0.0
        %1034 = vmatprep.subr.mxu0 0.0
        %1035 = vmatpush2.msra.mxu0 0.0
        %1036 = vmatprep.subr.mxu0 0.0
        %1037 = vmatpush2.msra.mxu0 0.0
        %1038 = vmatprep.subr.mxu0 0.0
        %1039 = vmatpush2.msra.mxu0 0.0
        %1040 = vmatprep.subr.mxu0 0.0
        %1041 = vmatpush2.msra.mxu0 0.0
        %1042 = vmatprep.subr.mxu0 0.0
        %1043 = vmatpush2.msra.mxu0 0.0
        %1044 = vmatprep.subr.mxu0 0.0
        %1045 = vmatpush2.msra.mxu0 0.0
        %1046 = vmatprep.subr.mxu0 0.0
        %1047 = vmatpush2.msra.mxu0 0.0
        %1048 = vmatprep.subr.mxu0 0.0
        %1049 = vmatpush2.msra.mxu0 0.0
        %1050 = vmatprep.subr.mxu0 0.0
        %1051 = vmatpush2.msra.mxu0 0.0
        %1052 = vmatprep.subr.mxu0 0.0
        %1053 = vmatpush2.msra.mxu0 0.0
        %1054 = vmatprep.subr.mxu0 0.0
        %1055 = vmatpush2.msra.mxu0 0.0
        %1056 = vmatprep.subr.mxu0 0.0
        %1057 = vmatpush2.msra.mxu0 0.0
        %1058 = vmatprep.subr.mxu0 0.0
        %1059 = vmatpush2.msra.mxu0 0.0
        %1060 = vmatprep.mubr.f32.mxu0 0.0
        %1061 = vmatmul.mubr.f32.gmra.mxu0 %v985
        %v1062 = vpop.f32.mrf.mxu0
        %v1063 = vadd.f32 0.0, %v1062
        %v1064 = vpop.f32.mrf.mxu0
        %1065 = vmatprep.mubr.f32.mxu0 0.0
        %1066 = vmatmul.mubr.f32.gmra.mxu0 %v988
        %v1067 = vpop.f32.mrf.mxu0
        %v1068 = vadd.f32 0.0, %v1067
        %v1069 = vpop.f32.mrf.mxu0
        %1070 = vmatprep.mubr.f32.mxu0 0.0
        %1071 = vmatmul.mubr.f32.gmra.mxu0 %v991
        %v1072 = vpop.f32.mrf.mxu0
        %v1073 = vadd.f32 0.0, %v1072
        %v1074 = vpop.f32.mrf.mxu0
        %1075 = vmatprep.mubr.f32.mxu0 0.0
        %1076 = vmatmul.mubr.f32.gmra.mxu0 %v994
        %v1077 = vpop.f32.mrf.mxu0
        %v1078 = vadd.f32 0.0, %v1077
        %v1079 = vpop.f32.mrf.mxu0
        %1080 = vdwg.mxu0
        %v1081 = vsub.f32 %v962, %v1063
        %v1082 = vsub.f32 %v967, %v1068
        %v1083 = vsub.f32 %v972, %v1073
        %v1084 = vsub.f32 %v977, %v1078
        %1085 = vmatprep.subr.mxu0 0.0
        %1086 = vmatpush1.msra.mxu0 0.0
        %1087 = vmatprep.subr.mxu0 0.0
        %1088 = vmatpush1.msra.mxu0 0.0
        %1089 = vmatprep.subr.mxu0 0.0
        %1090 = vmatpush1.msra.mxu0 0.0
        %1091 = vmatprep.subr.mxu0 0.0
        %1092 = vmatpush1.msra.mxu0 0.0
        %1093 = vmatprep.subr.mxu0 0.0
        %1094 = vmatpush1.msra.mxu0 0.0
        %1095 = vmatprep.subr.mxu0 0.0
        %1096 = vmatpush1.msra.mxu0 0.0
        %1097 = vmatprep.subr.mxu0 0.0
        %1098 = vmatpush1.msra.mxu0 0.0
        %1099 = vmatprep.subr.mxu0 0.0
        %1100 = vmatpush1.msra.mxu0 0.0
        %1101 = vmatprep.subr.mxu0 0.0
        %1102 = vmatpush1.msra.mxu0 0.0
        %1103 = vmatprep.subr.mxu0 0.0
        %1104 = vmatpush1.msra.mxu0 0.0
        %1105 = vmatprep.subr.mxu0 0.0
        %1106 = vmatpush1.msra.mxu0 0.0
        %1107 = vmatprep.subr.mxu0 0.0
        %1108 = vmatpush1.msra.mxu0 0.0
        %1109 = vmatprep.subr.mxu0 0.0
        %1110 = vmatpush1.msra.mxu0 %v882
        %1111 = vmatprep.subr.mxu0 0.0
        %1112 = vmatpush1.msra.mxu0 %v881
        %1113 = vmatprep.subr.mxu0 0.0
        %1114 = vmatpush1.msra.mxu0 %v880
        %1115 = vmatprep.subr.mxu0 0.0
        %1116 = vmatpush1.msra.mxu0 %v879
        %1117 = vmatprep.subr.mxu0 0.0
        %1118 = vmatpush2.msra.mxu0 0.0
        %1119 = vmatprep.subr.mxu0 0.0
        %1120 = vmatpush2.msra.mxu0 0.0
        %1121 = vmatprep.subr.mxu0 0.0
        %1122 = vmatpush2.msra.mxu0 0.0
        %1123 = vmatprep.subr.mxu0 0.0
        %1124 = vmatpush2.msra.mxu0 0.0
        %1125 = vmatprep.subr.mxu0 0.0
        %1126 = vmatpush2.msra.mxu0 0.0
        %1127 = vmatprep.subr.mxu0 0.0
        %1128 = vmatpush2.msra.mxu0 0.0
        %1129 = vmatprep.subr.mxu0 0.0
        %1130 = vmatpush2.msra.mxu0 0.0
        %1131 = vmatprep.subr.mxu0 0.0
        %1132 = vmatpush2.msra.mxu0 0.0
        %1133 = vmatprep.subr.mxu0 0.0
        %1134 = vmatpush2.msra.mxu0 0.0
        %1135 = vmatprep.subr.mxu0 0.0
        %1136 = vmatpush2.msra.mxu0 0.0
        %1137 = vmatprep.subr.mxu0 0.0
        %1138 = vmatpush2.msra.mxu0 0.0
        %1139 = vmatprep.subr.mxu0 0.0
        %1140 = vmatpush2.msra.mxu0 0.0
        %1141 = vmatprep.subr.mxu0 0.0
        %1142 = vmatpush2.msra.mxu0 0.0
        %1143 = vmatprep.subr.mxu0 0.0
        %1144 = vmatpush2.msra.mxu0 0.0
        %1145 = vmatprep.subr.mxu0 0.0
        %1146 = vmatpush2.msra.mxu0 0.0
        %1147 = vmatprep.subr.mxu0 0.0
        %1148 = vmatpush2.msra.mxu0 0.0
        %1149 = vmatprep.mubr.f32.mxu0 0.0
        %1150 = vmatmul.mubr.f32.gmra.mxu0 %v985
        %v1151 = vpop.f32.mrf.mxu0
        %v1152 = vadd.f32 0.0, %v1151
        %v1153 = vpop.f32.mrf.mxu0
        %1154 = vmatprep.mubr.f32.mxu0 0.0
        %1155 = vmatmul.mubr.f32.gmra.mxu0 %v988
        %v1156 = vpop.f32.mrf.mxu0
        %v1157 = vadd.f32 0.0, %v1156
        %v1158 = vpop.f32.mrf.mxu0
        %1159 = vmatprep.mubr.f32.mxu0 0.0
        %1160 = vmatmul.mubr.f32.gmra.mxu0 %v991
        %v1161 = vpop.f32.mrf.mxu0
        %v1162 = vadd.f32 0.0, %v1161
        %v1163 = vpop.f32.mrf.mxu0
        %1164 = vmatprep.mubr.f32.mxu0 0.0
        %1165 = vmatmul.mubr.f32.gmra.mxu0 %v994
        %v1166 = vpop.f32.mrf.mxu0
        %v1167 = vadd.f32 0.0, %v1166
        %v1168 = vpop.f32.mrf.mxu0
        %1169 = vdwg.mxu0
        %1170 = vmatprep.subr.mxu0 0.0
        %1171 = vmatpush1.msra.mxu0 0.0
        %1172 = vmatprep.subr.mxu0 0.0
        %1173 = vmatpush1.msra.mxu0 0.0
        %1174 = vmatprep.subr.mxu0 0.0
        %1175 = vmatpush1.msra.mxu0 0.0
        %1176 = vmatprep.subr.mxu0 0.0
        %1177 = vmatpush1.msra.mxu0 0.0
        %1178 = vmatprep.subr.mxu0 0.0
        %1179 = vmatpush1.msra.mxu0 0.0
        %1180 = vmatprep.subr.mxu0 0.0
        %1181 = vmatpush1.msra.mxu0 0.0
        %1182 = vmatprep.subr.mxu0 0.0
        %1183 = vmatpush1.msra.mxu0 0.0
        %1184 = vmatprep.subr.mxu0 0.0
        %1185 = vmatpush1.msra.mxu0 0.0
        %1186 = vmatprep.subr.mxu0 0.0
        %1187 = vmatpush1.msra.mxu0 0.0
        %1188 = vmatprep.subr.mxu0 0.0
        %1189 = vmatpush1.msra.mxu0 0.0
        %1190 = vmatprep.subr.mxu0 0.0
        %1191 = vmatpush1.msra.mxu0 0.0
        %1192 = vmatprep.subr.mxu0 0.0
        %1193 = vmatpush1.msra.mxu0 0.0
        %1194 = vmatprep.subr.mxu0 0.0
        %1195 = vmatpush1.msra.mxu0 %v983
        %1196 = vmatprep.subr.mxu0 0.0
        %1197 = vmatpush1.msra.mxu0 %v982
        %1198 = vmatprep.subr.mxu0 0.0
        %1199 = vmatpush1.msra.mxu0 %v981
        %1200 = vmatprep.subr.mxu0 0.0
        %1201 = vmatpush1.msra.mxu0 %v980
        %1202 = vmatprep.subr.mxu0 0.0
        %1203 = vmatpush2.msra.mxu0 0.0
        %1204 = vmatprep.subr.mxu0 0.0
        %1205 = vmatpush2.msra.mxu0 0.0
        %1206 = vmatprep.subr.mxu0 0.0
        %1207 = vmatpush2.msra.mxu0 0.0
        %1208 = vmatprep.subr.mxu0 0.0
        %1209 = vmatpush2.msra.mxu0 0.0
        %1210 = vmatprep.subr.mxu0 0.0
        %1211 = vmatpush2.msra.mxu0 0.0
        %1212 = vmatprep.subr.mxu0 0.0
        %1213 = vmatpush2.msra.mxu0 0.0
        %1214 = vmatprep.subr.mxu0 0.0
        %1215 = vmatpush2.msra.mxu0 0.0
        %1216 = vmatprep.subr.mxu0 0.0
        %1217 = vmatpush2.msra.mxu0 0.0
        %1218 = vmatprep.subr.mxu0 0.0
        %1219 = vmatpush2.msra.mxu0 0.0
        %1220 = vmatprep.subr.mxu0 0.0
        %1221 = vmatpush2.msra.mxu0 0.0
        %1222 = vmatprep.subr.mxu0 0.0
        %1223 = vmatpush2.msra.mxu0 0.0
        %1224 = vmatprep.subr.mxu0 0.0
        %1225 = vmatpush2.msra.mxu0 0.0
        %1226 = vmatprep.subr.mxu0 0.0
        %1227 = vmatpush2.msra.mxu0 0.0
        %1228 = vmatprep.subr.mxu0 0.0
        %1229 = vmatpush2.msra.mxu0 0.0
        %1230 = vmatprep.subr.mxu0 0.0
        %1231 = vmatpush2.msra.mxu0 0.0
        %1232 = vmatprep.subr.mxu0 0.0
        %1233 = vmatpush2.msra.mxu0 0.0
        %1234 = vmatprep.mubr.f32.mxu0 0.0
        %1235 = vmatmul.mubr.f32.gmra.mxu0 %v884
        %v1236 = vpop.f32.mrf.mxu0
        %v1237 = vadd.f32 %v1152, %v1236
        %v1238 = vpop.f32.mrf.mxu0
        %1239 = vmatprep.mubr.f32.mxu0 0.0
        %1240 = vmatmul.mubr.f32.gmra.mxu0 %v887
        %v1241 = vpop.f32.mrf.mxu0
        %v1242 = vadd.f32 %v1157, %v1241
        %v1243 = vpop.f32.mrf.mxu0
        %1244 = vmatprep.mubr.f32.mxu0 0.0
        %1245 = vmatmul.mubr.f32.gmra.mxu0 %v890
        %v1246 = vpop.f32.mrf.mxu0
        %v1247 = vadd.f32 %v1162, %v1246
        %v1248 = vpop.f32.mrf.mxu0
        %1249 = vmatprep.mubr.f32.mxu0 0.0
        %1250 = vmatmul.mubr.f32.gmra.mxu0 %v893
        %v1251 = vpop.f32.mrf.mxu0
        %v1252 = vadd.f32 %v1167, %v1251
        %v1253 = vpop.f32.mrf.mxu0
        %1254 = vdwg.mxu0
        %v1255 = vmul.f32 %v1081, %v1081
        %v1256 = vmul.f32 %v1082, %v1082
        %v1257 = vmul.f32 %v1083, %v1083
        %v1258 = vmul.f32 %v1084, %v1084
        %v1259 = vmul.f32 %v1237, %v1237
        %v1260 = vmul.f32 %v1242, %v1242
        %v1261 = vmul.f32 %v1247, %v1247
        %v1262 = vmul.f32 %v1252, %v1252
        %v1263 = vadd.f32 %v1255, %v1259
        %v1264 = vadd.f32 %v1256, %v1260
        %v1265 = vadd.f32 %v1257, %v1261
        %v1266 = vadd.f32 %v1258, %v1262
        %v1267 = vrsqrt.pop %v1263
        %v1268 = vmul.f32 %v1263, %v1267
        %vm1269 = vcmp.eq.f32.partialorder %v1263, inf
        %v1270 = vsel %vm1269, %v1263, %v1268
        %vm1271 = vcmp.eq.f32.partialorder %v1263, 0.0
        %v1272 = vand.u32 %v1263, 2147483648
        %v1273 = vsel %vm1271, %v1272, %v1270
        %v1274 = vrsqrt.pop %v1264
        %v1275 = vmul.f32 %v1264, %v1274
        %vm1276 = vcmp.eq.f32.partialorder %v1264, inf
        %v1277 = vsel %vm1276, %v1264, %v1275
        %vm1278 = vcmp.eq.f32.partialorder %v1264, 0.0
        %v1279 = vand.u32 %v1264, 2147483648
        %v1280 = vsel %vm1278, %v1279, %v1277
        %v1281 = vrsqrt.pop %v1265
        %v1282 = vmul.f32 %v1265, %v1281
        %vm1283 = vcmp.eq.f32.partialorder %v1265, inf
        %v1284 = vsel %vm1283, %v1265, %v1282
        %vm1285 = vcmp.eq.f32.partialorder %v1265, 0.0
        %v1286 = vand.u32 %v1265, 2147483648
        %v1287 = vsel %vm1285, %v1286, %v1284
        %v1288 = vrsqrt.pop %v1266
        %v1289 = vmul.f32 %v1266, %v1288
        %vm1290 = vcmp.eq.f32.partialorder %v1266, inf
        %v1291 = vsel %vm1290, %v1266, %v1289
        %vm1292 = vcmp.eq.f32.partialorder %v1266, 0.0
        %v1293 = vand.u32 %v1266, 2147483648
        %v1294 = vsel %vm1292, %v1293, %v1291
        %v1295 = vadd.f32 %v1273, 4.539993e-05
        %v1296 = vadd.f32 %v1280, 4.539993e-05
        %v1297 = vadd.f32 %v1287, 4.539993e-05
        %v1298 = vadd.f32 %v1294, 4.539993e-05
        %v1299 = vlog2.pop %v1295
        %v1300 = vmul.f32 %v1299, 0.6931472
        %v1301 = vlog2.pop %v1296
        %v1302 = vmul.f32 %v1301, 0.6931472
        %v1303 = vlog2.pop %v1297
        %v1304 = vmul.f32 %v1303, 0.6931472
        %v1305 = vlog2.pop %v1298
        %v1306 = vmul.f32 %v1305, 0.6931472
        %v1307 = vld [vmem:[#allocation19] sm:$0xff]
        %v1308 = vld [vmem:[#allocation19 + $0x8] sm:$0xff]
        %v1309 = vld [vmem:[#allocation19 + $0x10] sm:$0xff]
        %v1310 = vld [vmem:[#allocation19 + $0x18] sm:$0xff]
        %v1312 = vsel %vm680, %v1307, 0
        %v1315 = vsel %vm680, %v1308, 0
        %v1318 = vsel %vm680, %v1309, 0
        %v1321 = vsel %vm680, %v1310, 0
        %1323 = vmatprep.subr.mxu0 0.0
        %1324 = vmatpush1.msra.mxu0 0.0
        %1325 = vmatprep.subr.mxu0 0.0
        %1326 = vmatpush1.msra.mxu0 0.0
        %1327 = vmatprep.subr.mxu0 0.0
        %1328 = vmatpush1.msra.mxu0 0.0
        %1329 = vmatprep.subr.mxu0 0.0
        %1330 = vmatpush1.msra.mxu0 0.0
        %1331 = vmatprep.subr.mxu0 0.0
        %1332 = vmatpush1.msra.mxu0 0.0
        %1333 = vmatprep.subr.mxu0 0.0
        %1334 = vmatpush1.msra.mxu0 0.0
        %1335 = vmatprep.subr.mxu0 0.0
        %1336 = vmatpush1.msra.mxu0 0.0
        %1337 = vmatprep.subr.mxu0 0.0
        %1338 = vmatpush1.msra.mxu0 0.0
        %1339 = vmatprep.subr.mxu0 0.0
        %1340 = vmatpush1.msra.mxu0 0.0
        %1341 = vmatprep.subr.mxu0 0.0
        %1342 = vmatpush1.msra.mxu0 0.0
        %1343 = vmatprep.subr.mxu0 0.0
        %1344 = vmatpush1.msra.mxu0 0.0
        %1345 = vmatprep.subr.mxu0 0.0
        %1346 = vmatpush1.msra.mxu0 0.0
        %1347 = vmatprep.subr.mxu0 0.0
        %1348 = vmatpush1.msra.mxu0 %v1306
        %1349 = vmatprep.subr.mxu0 0.0
        %1350 = vmatpush1.msra.mxu0 %v1304
        %1351 = vmatprep.subr.mxu0 0.0
        %1352 = vmatpush1.msra.mxu0 %v1302
        %1353 = vmatprep.subr.mxu0 0.0
        %1354 = vmatpush1.msra.mxu0 %v1300
        %1355 = vmatprep.subr.mxu0 0.0
        %1356 = vmatpush2.msra.mxu0 0.0
        %1357 = vmatprep.subr.mxu0 0.0
        %1358 = vmatpush2.msra.mxu0 0.0
        %1359 = vmatprep.subr.mxu0 0.0
        %1360 = vmatpush2.msra.mxu0 0.0
        %1361 = vmatprep.subr.mxu0 0.0
        %1362 = vmatpush2.msra.mxu0 0.0
        %1363 = vmatprep.subr.mxu0 0.0
        %1364 = vmatpush2.msra.mxu0 0.0
        %1365 = vmatprep.subr.mxu0 0.0
        %1366 = vmatpush2.msra.mxu0 0.0
        %1367 = vmatprep.subr.mxu0 0.0
        %1368 = vmatpush2.msra.mxu0 0.0
        %1369 = vmatprep.subr.mxu0 0.0
        %1370 = vmatpush2.msra.mxu0 0.0
        %1371 = vmatprep.subr.mxu0 0.0
        %1372 = vmatpush2.msra.mxu0 0.0
        %1373 = vmatprep.subr.mxu0 0.0
        %1374 = vmatpush2.msra.mxu0 0.0
        %1375 = vmatprep.subr.mxu0 0.0
        %1376 = vmatpush2.msra.mxu0 0.0
        %1377 = vmatprep.subr.mxu0 0.0
        %1378 = vmatpush2.msra.mxu0 0.0
        %1379 = vmatprep.subr.mxu0 0.0
        %1380 = vmatpush2.msra.mxu0 0.0
        %1381 = vmatprep.subr.mxu0 0.0
        %1382 = vmatpush2.msra.mxu0 0.0
        %1383 = vmatprep.subr.mxu0 0.0
        %1384 = vmatpush2.msra.mxu0 0.0
        %1385 = vmatprep.subr.mxu0 0.0
        %1386 = vmatpush2.msra.mxu0 0.0
        %1387 = vmatprep.mubr.f32.mxu0 0.0
        %1388 = vmatmul.mubr.f32.gmra.mxu0 %v1312
        %v1389 = vpop.f32.mrf.mxu0
        %v1390 = vadd.f32 0.0, %v1389
        %v1391 = vpop.f32.mrf.mxu0
        %1392 = vmatprep.mubr.f32.mxu0 0.0
        %1393 = vmatmul.mubr.f32.gmra.mxu0 %v1315
        %v1394 = vpop.f32.mrf.mxu0
        %v1395 = vadd.f32 0.0, %v1394
        %v1396 = vpop.f32.mrf.mxu0
        %1397 = vmatprep.mubr.f32.mxu0 0.0
        %1398 = vmatmul.mubr.f32.gmra.mxu0 %v1318
        %v1399 = vpop.f32.mrf.mxu0
        %v1400 = vadd.f32 0.0, %v1399
        %v1401 = vpop.f32.mrf.mxu0
        %1402 = vmatprep.mubr.f32.mxu0 0.0
        %1403 = vmatmul.mubr.f32.gmra.mxu0 %v1321
        %v1404 = vpop.f32.mrf.mxu0
        %v1405 = vadd.f32 0.0, %v1404
        %v1406 = vpop.f32.mrf.mxu0
        %1407 = vdwg.mxu0
        %v1408 = vld [vmem:[#allocation21] sm:$0xff]
        %v1409 = vld [vmem:[#allocation21 + $0x8] sm:$0xff]
        %v1410 = vld [vmem:[#allocation21 + $0x10] sm:$0xff]
        %v1411 = vld [vmem:[#allocation21 + $0x18] sm:$0xff]
        %v1413 = vsel %vm680, %v1390, 0
        %v1416 = vsel %vm680, %v1395, 0
        %v1419 = vsel %vm680, %v1400, 0
        %v1422 = vsel %vm680, %v1405, 0
        %1424 = vmatprep.subr.mxu0 0.0
        %1425 = vmatpush1.msra.mxu0 0.0
        %1426 = vmatprep.subr.mxu0 0.0
        %1427 = vmatpush1.msra.mxu0 0.0
        %1428 = vmatprep.subr.mxu0 0.0
        %1429 = vmatpush1.msra.mxu0 0.0
        %1430 = vmatprep.subr.mxu0 0.0
        %1431 = vmatpush1.msra.mxu0 0.0
        %1432 = vmatprep.subr.mxu0 0.0
        %1433 = vmatpush1.msra.mxu0 0.0
        %1434 = vmatprep.subr.mxu0 0.0
        %1435 = vmatpush1.msra.mxu0 0.0
        %1436 = vmatprep.subr.mxu0 0.0
        %1437 = vmatpush1.msra.mxu0 0.0
        %1438 = vmatprep.subr.mxu0 0.0
        %1439 = vmatpush1.msra.mxu0 0.0
        %1440 = vmatprep.subr.mxu0 0.0
        %1441 = vmatpush1.msra.mxu0 0.0
        %1442 = vmatprep.subr.mxu0 0.0
        %1443 = vmatpush1.msra.mxu0 0.0
        %1444 = vmatprep.subr.mxu0 0.0
        %1445 = vmatpush1.msra.mxu0 0.0
        %1446 = vmatprep.subr.mxu0 0.0
        %1447 = vmatpush1.msra.mxu0 0.0
        %1448 = vmatprep.subr.mxu0 0.0
        %1449 = vmatpush1.msra.mxu0 %v1411
        %1450 = vmatprep.subr.mxu0 0.0
        %1451 = vmatpush1.msra.mxu0 %v1410
        %1452 = vmatprep.subr.mxu0 0.0
        %1453 = vmatpush1.msra.mxu0 %v1409
        %1454 = vmatprep.subr.mxu0 0.0
        %1455 = vmatpush1.msra.mxu0 %v1408
        %1456 = vmatprep.subr.mxu0 0.0
        %1457 = vmatpush2.msra.mxu0 0.0
        %1458 = vmatprep.subr.mxu0 0.0
        %1459 = vmatpush2.msra.mxu0 0.0
        %1460 = vmatprep.subr.mxu0 0.0
        %1461 = vmatpush2.msra.mxu0 0.0
        %1462 = vmatprep.subr.mxu0 0.0
        %1463 = vmatpush2.msra.mxu0 0.0
        %1464 = vmatprep.subr.mxu0 0.0
        %1465 = vmatpush2.msra.mxu0 0.0
        %1466 = vmatprep.subr.mxu0 0.0
        %1467 = vmatpush2.msra.mxu0 0.0
        %1468 = vmatprep.subr.mxu0 0.0
        %1469 = vmatpush2.msra.mxu0 0.0
        %1470 = vmatprep.subr.mxu0 0.0
        %1471 = vmatpush2.msra.mxu0 0.0
        %1472 = vmatprep.subr.mxu0 0.0
        %1473 = vmatpush2.msra.mxu0 0.0
        %1474 = vmatprep.subr.mxu0 0.0
        %1475 = vmatpush2.msra.mxu0 0.0
        %1476 = vmatprep.subr.mxu0 0.0
        %1477 = vmatpush2.msra.mxu0 0.0
        %1478 = vmatprep.subr.mxu0 0.0
        %1479 = vmatpush2.msra.mxu0 0.0
        %1480 = vmatprep.subr.mxu0 0.0
        %1481 = vmatpush2.msra.mxu0 0.0
        %1482 = vmatprep.subr.mxu0 0.0
        %1483 = vmatpush2.msra.mxu0 0.0
        %1484 = vmatprep.subr.mxu0 0.0
        %1485 = vmatpush2.msra.mxu0 0.0
        %1486 = vmatprep.subr.mxu0 0.0
        %1487 = vmatpush2.msra.mxu0 0.0
        %1488 = vmatprep.mubr.f32.mxu0 0.0
        %1489 = vmatmul.mubr.f32.gmra.mxu0 %v1413
        %v1490 = vpop.f32.mrf.mxu0
        %v1491 = vadd.f32 0.0, %v1490
        %v1492 = vpop.f32.mrf.mxu0
        %1493 = vmatprep.mubr.f32.mxu0 0.0
        %1494 = vmatmul.mubr.f32.gmra.mxu0 %v1416
        %v1495 = vpop.f32.mrf.mxu0
        %v1496 = vadd.f32 0.0, %v1495
        %v1497 = vpop.f32.mrf.mxu0
        %1498 = vmatprep.mubr.f32.mxu0 0.0
        %1499 = vmatmul.mubr.f32.gmra.mxu0 %v1419
        %v1500 = vpop.f32.mrf.mxu0
        %v1501 = vadd.f32 0.0, %v1500
        %v1502 = vpop.f32.mrf.mxu0
        %1503 = vmatprep.mubr.f32.mxu0 0.0
        %1504 = vmatmul.mubr.f32.gmra.mxu0 %v1422
        %v1505 = vpop.f32.mrf.mxu0
        %v1506 = vadd.f32 0.0, %v1505
        %v1507 = vpop.f32.mrf.mxu0
        %1508 = vdwg.mxu0
        %v1509 = vsub.f32 %v1300, %v1491
        %v1510 = vsub.f32 %v1302, %v1496
        %v1511 = vsub.f32 %v1304, %v1501
        %v1512 = vsub.f32 %v1306, %v1506
        %v1513 = vmul.f32 %v1509, 1.442695
        %v1514 = vpow.pop %v1513
        %v1515 = vmul.f32 %v1510, 1.442695
        %v1516 = vpow.pop %v1515
        %v1517 = vmul.f32 %v1511, 1.442695
        %v1518 = vpow.pop %v1517
        %v1519 = vmul.f32 %v1512, 1.442695
        %v1520 = vpow.pop %v1519
        %v1521 = vmax.f32 %v1273, 1e-30
        %v1522 = vmax.f32 %v1280, 1e-30
        %v1523 = vmax.f32 %v1287, 1e-30
        %v1524 = vmax.f32 %v1294, 1e-30
        %v1525 = vrcp.pop %v1521
        %v1526 = vmul.f32 %v1514, %v1525
        %v1527 = vrcp.pop %v1522
        %v1528 = vmul.f32 %v1516, %v1527
        %v1529 = vrcp.pop %v1523
        %v1530 = vmul.f32 %v1518, %v1529
        %v1531 = vrcp.pop %v1524
        %v1532 = vmul.f32 %v1520, %v1531
        %v1533 = vmul.f32 %v1526, %v1081
        %v1534 = vmul.f32 %v1528, %v1082
        %v1535 = vmul.f32 %v1530, %v1083
        %v1536 = vmul.f32 %v1532, %v1084
        %v1537 = vmul.f32 %v1526, %v1237
        %v1538 = vmul.f32 %v1528, %v1242
        %v1539 = vmul.f32 %v1530, %v1247
        %v1540 = vmul.f32 %v1532, %v1252
        %v1541 = vld [vmem:[#allocation13] sm:$0xff]
        %v1542 = vld [vmem:[#allocation13 + $0x8] sm:$0xff]
        %v1543 = vld [vmem:[#allocation13 + $0x10] sm:$0xff]
        %v1544 = vld [vmem:[#allocation13 + $0x18] sm:$0xff]
        %v1546 = vsel %vm680, %v1541, 0
        %v1549 = vsel %vm680, %v1542, 0
        %v1552 = vsel %vm680, %v1543, 0
        %v1555 = vsel %vm680, %v1544, 0
        %1557 = vmatprep.subr.mxu0 0.0
        %1558 = vmatpush1.msra.mxu0 0.0
        %1559 = vmatprep.subr.mxu0 0.0
        %1560 = vmatpush1.msra.mxu0 0.0
        %1561 = vmatprep.subr.mxu0 0.0
        %1562 = vmatpush1.msra.mxu0 0.0
        %1563 = vmatprep.subr.mxu0 0.0
        %1564 = vmatpush1.msra.mxu0 0.0
        %1565 = vmatprep.subr.mxu0 0.0
        %1566 = vmatpush1.msra.mxu0 0.0
        %1567 = vmatprep.subr.mxu0 0.0
        %1568 = vmatpush1.msra.mxu0 0.0
        %1569 = vmatprep.subr.mxu0 0.0
        %1570 = vmatpush1.msra.mxu0 0.0
        %1571 = vmatprep.subr.mxu0 0.0
        %1572 = vmatpush1.msra.mxu0 0.0
        %1573 = vmatprep.subr.mxu0 0.0
        %1574 = vmatpush1.msra.mxu0 0.0
        %1575 = vmatprep.subr.mxu0 0.0
        %1576 = vmatpush1.msra.mxu0 0.0
        %1577 = vmatprep.subr.mxu0 0.0
        %1578 = vmatpush1.msra.mxu0 0.0
        %1579 = vmatprep.subr.mxu0 0.0
        %1580 = vmatpush1.msra.mxu0 0.0
        %1581 = vmatprep.subr.mxu0 0.0
        %1582 = vmatpush1.msra.mxu0 %v1536
        %1583 = vmatprep.subr.mxu0 0.0
        %1584 = vmatpush1.msra.mxu0 %v1535
        %1585 = vmatprep.subr.mxu0 0.0
        %1586 = vmatpush1.msra.mxu0 %v1534
        %1587 = vmatprep.subr.mxu0 0.0
        %1588 = vmatpush1.msra.mxu0 %v1533
        %1589 = vmatprep.subr.mxu0 0.0
        %1590 = vmatpush2.msra.mxu0 0.0
        %1591 = vmatprep.subr.mxu0 0.0
        %1592 = vmatpush2.msra.mxu0 0.0
        %1593 = vmatprep.subr.mxu0 0.0
        %1594 = vmatpush2.msra.mxu0 0.0
        %1595 = vmatprep.subr.mxu0 0.0
        %1596 = vmatpush2.msra.mxu0 0.0
        %1597 = vmatprep.subr.mxu0 0.0
        %1598 = vmatpush2.msra.mxu0 0.0
        %1599 = vmatprep.subr.mxu0 0.0
        %1600 = vmatpush2.msra.mxu0 0.0
        %1601 = vmatprep.subr.mxu0 0.0
        %1602 = vmatpush2.msra.mxu0 0.0
        %1603 = vmatprep.subr.mxu0 0.0
        %1604 = vmatpush2.msra.mxu0 0.0
        %1605 = vmatprep.subr.mxu0 0.0
        %1606 = vmatpush2.msra.mxu0 0.0
        %1607 = vmatprep.subr.mxu0 0.0
        %1608 = vmatpush2.msra.mxu0 0.0
        %1609 = vmatprep.subr.mxu0 0.0
        %1610 = vmatpush2.msra.mxu0 0.0
        %1611 = vmatprep.subr.mxu0 0.0
        %1612 = vmatpush2.msra.mxu0 0.0
        %1613 = vmatprep.subr.mxu0 0.0
        %1614 = vmatpush2.msra.mxu0 0.0
        %1615 = vmatprep.subr.mxu0 0.0
        %1616 = vmatpush2.msra.mxu0 0.0
        %1617 = vmatprep.subr.mxu0 0.0
        %1618 = vmatpush2.msra.mxu0 0.0
        %1619 = vmatprep.subr.mxu0 0.0
        %1620 = vmatpush2.msra.mxu0 0.0
        %1621 = vmatprep.mubr.f32.mxu0 0.0
        %1622 = vmatmul.mubr.f32.gmra.mxu0 %v1546
        %v1623 = vpop.f32.mrf.mxu0
        %v1624 = vadd.f32 0.0, %v1623
        %v1625 = vpop.f32.mrf.mxu0
        %1626 = vmatprep.mubr.f32.mxu0 0.0
        %1627 = vmatmul.mubr.f32.gmra.mxu0 %v1549
        %v1628 = vpop.f32.mrf.mxu0
        %v1629 = vadd.f32 0.0, %v1628
        %v1630 = vpop.f32.mrf.mxu0
        %1631 = vmatprep.mubr.f32.mxu0 0.0
        %1632 = vmatmul.mubr.f32.gmra.mxu0 %v1552
        %v1633 = vpop.f32.mrf.mxu0
        %v1634 = vadd.f32 0.0, %v1633
        %v1635 = vpop.f32.mrf.mxu0
        %1636 = vmatprep.mubr.f32.mxu0 0.0
        %1637 = vmatmul.mubr.f32.gmra.mxu0 %v1555
        %v1638 = vpop.f32.mrf.mxu0
        %v1639 = vadd.f32 0.0, %v1638
        %v1640 = vpop.f32.mrf.mxu0
        %1641 = vdwg.mxu0
        %v1642 = vld [vmem:[#allocation15] sm:$0xff]
        %v1643 = vld [vmem:[#allocation15 + $0x8] sm:$0xff]
        %v1644 = vld [vmem:[#allocation15 + $0x10] sm:$0xff]
        %v1645 = vld [vmem:[#allocation15 + $0x18] sm:$0xff]
        %v1647 = vsel %vm680, %v1642, 0
        %v1650 = vsel %vm680, %v1643, 0
        %v1653 = vsel %vm680, %v1644, 0
        %v1656 = vsel %vm680, %v1645, 0
        %1658 = vmatprep.subr.mxu0 0.0
        %1659 = vmatpush1.msra.mxu0 0.0
        %1660 = vmatprep.subr.mxu0 0.0
        %1661 = vmatpush1.msra.mxu0 0.0
        %1662 = vmatprep.subr.mxu0 0.0
        %1663 = vmatpush1.msra.mxu0 0.0
        %1664 = vmatprep.subr.mxu0 0.0
        %1665 = vmatpush1.msra.mxu0 0.0
        %1666 = vmatprep.subr.mxu0 0.0
        %1667 = vmatpush1.msra.mxu0 0.0
        %1668 = vmatprep.subr.mxu0 0.0
        %1669 = vmatpush1.msra.mxu0 0.0
        %1670 = vmatprep.subr.mxu0 0.0
        %1671 = vmatpush1.msra.mxu0 0.0
        %1672 = vmatprep.subr.mxu0 0.0
        %1673 = vmatpush1.msra.mxu0 0.0
        %1674 = vmatprep.subr.mxu0 0.0
        %1675 = vmatpush1.msra.mxu0 0.0
        %1676 = vmatprep.subr.mxu0 0.0
        %1677 = vmatpush1.msra.mxu0 0.0
        %1678 = vmatprep.subr.mxu0 0.0
        %1679 = vmatpush1.msra.mxu0 0.0
        %1680 = vmatprep.subr.mxu0 0.0
        %1681 = vmatpush1.msra.mxu0 0.0
        %1682 = vmatprep.subr.mxu0 0.0
        %1683 = vmatpush1.msra.mxu0 %v1540
        %1684 = vmatprep.subr.mxu0 0.0
        %1685 = vmatpush1.msra.mxu0 %v1539
        %1686 = vmatprep.subr.mxu0 0.0
        %1687 = vmatpush1.msra.mxu0 %v1538
        %1688 = vmatprep.subr.mxu0 0.0
        %1689 = vmatpush1.msra.mxu0 %v1537
        %1690 = vmatprep.subr.mxu0 0.0
        %1691 = vmatpush2.msra.mxu0 0.0
        %1692 = vmatprep.subr.mxu0 0.0
        %1693 = vmatpush2.msra.mxu0 0.0
        %1694 = vmatprep.subr.mxu0 0.0
        %1695 = vmatpush2.msra.mxu0 0.0
        %1696 = vmatprep.subr.mxu0 0.0
        %1697 = vmatpush2.msra.mxu0 0.0
        %1698 = vmatprep.subr.mxu0 0.0
        %1699 = vmatpush2.msra.mxu0 0.0
        %1700 = vmatprep.subr.mxu0 0.0
        %1701 = vmatpush2.msra.mxu0 0.0
        %1702 = vmatprep.subr.mxu0 0.0
        %1703 = vmatpush2.msra.mxu0 0.0
        %1704 = vmatprep.subr.mxu0 0.0
        %1705 = vmatpush2.msra.mxu0 0.0
        %1706 = vmatprep.subr.mxu0 0.0
        %1707 = vmatpush2.msra.mxu0 0.0
        %1708 = vmatprep.subr.mxu0 0.0
        %1709 = vmatpush2.msra.mxu0 0.0
        %1710 = vmatprep.subr.mxu0 0.0
        %1711 = vmatpush2.msra.mxu0 0.0
        %1712 = vmatprep.subr.mxu0 0.0
        %1713 = vmatpush2.msra.mxu0 0.0
        %1714 = vmatprep.subr.mxu0 0.0
        %1715 = vmatpush2.msra.mxu0 0.0
        %1716 = vmatprep.subr.mxu0 0.0
        %1717 = vmatpush2.msra.mxu0 0.0
        %1718 = vmatprep.subr.mxu0 0.0
        %1719 = vmatpush2.msra.mxu0 0.0
        %1720 = vmatprep.subr.mxu0 0.0
        %1721 = vmatpush2.msra.mxu0 0.0
        %1722 = vmatprep.mubr.f32.mxu0 0.0
        %1723 = vmatmul.mubr.f32.gmra.mxu0 %v1647
        %v1724 = vpop.f32.mrf.mxu0
        %v1725 = vadd.f32 0.0, %v1724
        %v1726 = vpop.f32.mrf.mxu0
        %1727 = vmatprep.mubr.f32.mxu0 0.0
        %1728 = vmatmul.mubr.f32.gmra.mxu0 %v1650
        %v1729 = vpop.f32.mrf.mxu0
        %v1730 = vadd.f32 0.0, %v1729
        %v1731 = vpop.f32.mrf.mxu0
        %1732 = vmatprep.mubr.f32.mxu0 0.0
        %1733 = vmatmul.mubr.f32.gmra.mxu0 %v1653
        %v1734 = vpop.f32.mrf.mxu0
        %v1735 = vadd.f32 0.0, %v1734
        %v1736 = vpop.f32.mrf.mxu0
        %1737 = vmatprep.mubr.f32.mxu0 0.0
        %1738 = vmatmul.mubr.f32.gmra.mxu0 %v1656
        %v1739 = vpop.f32.mrf.mxu0
        %v1740 = vadd.f32 0.0, %v1739
        %v1741 = vpop.f32.mrf.mxu0
        %1742 = vdwg.mxu0
        %v1743 = vsub.f32 %v1624, %v1725
        %v1744 = vsub.f32 %v1629, %v1730
        %v1745 = vsub.f32 %v1634, %v1735
        %v1746 = vsub.f32 %v1639, %v1740
        %1747 = vmatprep.subr.mxu0 0.0
        %1748 = vmatpush1.msra.mxu0 0.0
        %1749 = vmatprep.subr.mxu0 0.0
        %1750 = vmatpush1.msra.mxu0 0.0
        %1751 = vmatprep.subr.mxu0 0.0
        %1752 = vmatpush1.msra.mxu0 0.0
        %1753 = vmatprep.subr.mxu0 0.0
        %1754 = vmatpush1.msra.mxu0 0.0
        %1755 = vmatprep.subr.mxu0 0.0
        %1756 = vmatpush1.msra.mxu0 0.0
        %1757 = vmatprep.subr.mxu0 0.0
        %1758 = vmatpush1.msra.mxu0 0.0
        %1759 = vmatprep.subr.mxu0 0.0
        %1760 = vmatpush1.msra.mxu0 0.0
        %1761 = vmatprep.subr.mxu0 0.0
        %1762 = vmatpush1.msra.mxu0 0.0
        %1763 = vmatprep.subr.mxu0 0.0
        %1764 = vmatpush1.msra.mxu0 0.0
        %1765 = vmatprep.subr.mxu0 0.0
        %1766 = vmatpush1.msra.mxu0 0.0
        %1767 = vmatprep.subr.mxu0 0.0
        %1768 = vmatpush1.msra.mxu0 0.0
        %1769 = vmatprep.subr.mxu0 0.0
        %1770 = vmatpush1.msra.mxu0 0.0
        %1771 = vmatprep.subr.mxu0 0.0
        %1772 = vmatpush1.msra.mxu0 %v1536
        %1773 = vmatprep.subr.mxu0 0.0
        %1774 = vmatpush1.msra.mxu0 %v1535
        %1775 = vmatprep.subr.mxu0 0.0
        %1776 = vmatpush1.msra.mxu0 %v1534
        %1777 = vmatprep.subr.mxu0 0.0
        %1778 = vmatpush1.msra.mxu0 %v1533
        %1779 = vmatprep.subr.mxu0 0.0
        %1780 = vmatpush2.msra.mxu0 0.0
        %1781 = vmatprep.subr.mxu0 0.0
        %1782 = vmatpush2.msra.mxu0 0.0
        %1783 = vmatprep.subr.mxu0 0.0
        %1784 = vmatpush2.msra.mxu0 0.0
        %1785 = vmatprep.subr.mxu0 0.0
        %1786 = vmatpush2.msra.mxu0 0.0
        %1787 = vmatprep.subr.mxu0 0.0
        %1788 = vmatpush2.msra.mxu0 0.0
        %1789 = vmatprep.subr.mxu0 0.0
        %1790 = vmatpush2.msra.mxu0 0.0
        %1791 = vmatprep.subr.mxu0 0.0
        %1792 = vmatpush2.msra.mxu0 0.0
        %1793 = vmatprep.subr.mxu0 0.0
        %1794 = vmatpush2.msra.mxu0 0.0
        %1795 = vmatprep.subr.mxu0 0.0
        %1796 = vmatpush2.msra.mxu0 0.0
        %1797 = vmatprep.subr.mxu0 0.0
        %1798 = vmatpush2.msra.mxu0 0.0
        %1799 = vmatprep.subr.mxu0 0.0
        %1800 = vmatpush2.msra.mxu0 0.0
        %1801 = vmatprep.subr.mxu0 0.0
        %1802 = vmatpush2.msra.mxu0 0.0
        %1803 = vmatprep.subr.mxu0 0.0
        %1804 = vmatpush2.msra.mxu0 0.0
        %1805 = vmatprep.subr.mxu0 0.0
        %1806 = vmatpush2.msra.mxu0 0.0
        %1807 = vmatprep.subr.mxu0 0.0
        %1808 = vmatpush2.msra.mxu0 0.0
        %1809 = vmatprep.subr.mxu0 0.0
        %1810 = vmatpush2.msra.mxu0 0.0
        %1811 = vmatprep.mubr.f32.mxu0 0.0
        %1812 = vmatmul.mubr.f32.gmra.mxu0 %v1647
        %v1813 = vpop.f32.mrf.mxu0
        %v1814 = vadd.f32 0.0, %v1813
        %v1815 = vpop.f32.mrf.mxu0
        %1816 = vmatprep.mubr.f32.mxu0 0.0
        %1817 = vmatmul.mubr.f32.gmra.mxu0 %v1650
        %v1818 = vpop.f32.mrf.mxu0
        %v1819 = vadd.f32 0.0, %v1818
        %v1820 = vpop.f32.mrf.mxu0
        %1821 = vmatprep.mubr.f32.mxu0 0.0
        %1822 = vmatmul.mubr.f32.gmra.mxu0 %v1653
        %v1823 = vpop.f32.mrf.mxu0
        %v1824 = vadd.f32 0.0, %v1823
        %v1825 = vpop.f32.mrf.mxu0
        %1826 = vmatprep.mubr.f32.mxu0 0.0
        %1827 = vmatmul.mubr.f32.gmra.mxu0 %v1656
        %v1828 = vpop.f32.mrf.mxu0
        %v1829 = vadd.f32 0.0, %v1828
        %v1830 = vpop.f32.mrf.mxu0
        %1831 = vdwg.mxu0
        %1832 = vmatprep.subr.mxu0 0.0
        %1833 = vmatpush1.msra.mxu0 0.0
        %1834 = vmatprep.subr.mxu0 0.0
        %1835 = vmatpush1.msra.mxu0 0.0
        %1836 = vmatprep.subr.mxu0 0.0
        %1837 = vmatpush1.msra.mxu0 0.0
        %1838 = vmatprep.subr.mxu0 0.0
        %1839 = vmatpush1.msra.mxu0 0.0
        %1840 = vmatprep.subr.mxu0 0.0
        %1841 = vmatpush1.msra.mxu0 0.0
        %1842 = vmatprep.subr.mxu0 0.0
        %1843 = vmatpush1.msra.mxu0 0.0
        %1844 = vmatprep.subr.mxu0 0.0
        %1845 = vmatpush1.msra.mxu0 0.0
        %1846 = vmatprep.subr.mxu0 0.0
        %1847 = vmatpush1.msra.mxu0 0.0
        %1848 = vmatprep.subr.mxu0 0.0
        %1849 = vmatpush1.msra.mxu0 0.0
        %1850 = vmatprep.subr.mxu0 0.0
        %1851 = vmatpush1.msra.mxu0 0.0
        %1852 = vmatprep.subr.mxu0 0.0
        %1853 = vmatpush1.msra.mxu0 0.0
        %1854 = vmatprep.subr.mxu0 0.0
        %1855 = vmatpush1.msra.mxu0 0.0
        %1856 = vmatprep.subr.mxu0 0.0
        %1857 = vmatpush1.msra.mxu0 %v1540
        %1858 = vmatprep.subr.mxu0 0.0
        %1859 = vmatpush1.msra.mxu0 %v1539
        %1860 = vmatprep.subr.mxu0 0.0
        %1861 = vmatpush1.msra.mxu0 %v1538
        %1862 = vmatprep.subr.mxu0 0.0
        %1863 = vmatpush1.msra.mxu0 %v1537
        %1864 = vmatprep.subr.mxu0 0.0
        %1865 = vmatpush2.msra.mxu0 0.0
        %1866 = vmatprep.subr.mxu0 0.0
        %1867 = vmatpush2.msra.mxu0 0.0
        %1868 = vmatprep.subr.mxu0 0.0
        %1869 = vmatpush2.msra.mxu0 0.0
        %1870 = vmatprep.subr.mxu0 0.0
        %1871 = vmatpush2.msra.mxu0 0.0
        %1872 = vmatprep.subr.mxu0 0.0
        %1873 = vmatpush2.msra.mxu0 0.0
        %1874 = vmatprep.subr.mxu0 0.0
        %1875 = vmatpush2.msra.mxu0 0.0
        %1876 = vmatprep.subr.mxu0 0.0
        %1877 = vmatpush2.msra.mxu0 0.0
        %1878 = vmatprep.subr.mxu0 0.0
        %1879 = vmatpush2.msra.mxu0 0.0
        %1880 = vmatprep.subr.mxu0 0.0
        %1881 = vmatpush2.msra.mxu0 0.0
        %1882 = vmatprep.subr.mxu0 0.0
        %1883 = vmatpush2.msra.mxu0 0.0
        %1884 = vmatprep.subr.mxu0 0.0
        %1885 = vmatpush2.msra.mxu0 0.0
        %1886 = vmatprep.subr.mxu0 0.0
        %1887 = vmatpush2.msra.mxu0 0.0
        %1888 = vmatprep.subr.mxu0 0.0
        %1889 = vmatpush2.msra.mxu0 0.0
        %1890 = vmatprep.subr.mxu0 0.0
        %1891 = vmatpush2.msra.mxu0 0.0
        %1892 = vmatprep.subr.mxu0 0.0
        %1893 = vmatpush2.msra.mxu0 0.0
        %1894 = vmatprep.subr.mxu0 0.0
        %1895 = vmatpush2.msra.mxu0 0.0
        %1896 = vmatprep.mubr.f32.mxu0 0.0
        %1897 = vmatmul.mubr.f32.gmra.mxu0 %v1546
        %v1898 = vpop.f32.mrf.mxu0
        %v1899 = vadd.f32 %v1814, %v1898
        %v1900 = vpop.f32.mrf.mxu0
        %1901 = vmatprep.mubr.f32.mxu0 0.0
        %1902 = vmatmul.mubr.f32.gmra.mxu0 %v1549
        %v1903 = vpop.f32.mrf.mxu0
        %v1904 = vadd.f32 %v1819, %v1903
        %v1905 = vpop.f32.mrf.mxu0
        %1906 = vmatprep.mubr.f32.mxu0 0.0
        %1907 = vmatmul.mubr.f32.gmra.mxu0 %v1552
        %v1908 = vpop.f32.mrf.mxu0
        %v1909 = vadd.f32 %v1824, %v1908
        %v1910 = vpop.f32.mrf.mxu0
        %1911 = vmatprep.mubr.f32.mxu0 0.0
        %1912 = vmatmul.mubr.f32.gmra.mxu0 %v1555
        %v1913 = vpop.f32.mrf.mxu0
        %v1914 = vadd.f32 %v1829, %v1913
        %v1915 = vpop.f32.mrf.mxu0
        %1916 = vdwg.mxu0
        %v1917 = vld [vmem:[#allocation16] sm:$0xff]
        %v1918 = vld [vmem:[#allocation16 + $0x8] sm:$0xff]
        %v1919 = vld [vmem:[#allocation16 + $0x10] sm:$0xff]
        %v1920 = vld [vmem:[#allocation16 + $0x18] sm:$0xff]
        %v1922 = vsel %vm680, %v1743, 0
        %v1925 = vsel %vm680, %v1744, 0
        %v1928 = vsel %vm680, %v1745, 0
        %v1931 = vsel %vm680, %v1746, 0
        %1933 = vmatprep.subr.mxu0 0.0
        %1934 = vmatpush1.msra.mxu0 0.0
        %1935 = vmatprep.subr.mxu0 0.0
        %1936 = vmatpush1.msra.mxu0 0.0
        %1937 = vmatprep.subr.mxu0 0.0
        %1938 = vmatpush1.msra.mxu0 0.0
        %1939 = vmatprep.subr.mxu0 0.0
        %1940 = vmatpush1.msra.mxu0 0.0
        %1941 = vmatprep.subr.mxu0 0.0
        %1942 = vmatpush1.msra.mxu0 0.0
        %1943 = vmatprep.subr.mxu0 0.0
        %1944 = vmatpush1.msra.mxu0 0.0
        %1945 = vmatprep.subr.mxu0 0.0
        %1946 = vmatpush1.msra.mxu0 0.0
        %1947 = vmatprep.subr.mxu0 0.0
        %1948 = vmatpush1.msra.mxu0 0.0
        %1949 = vmatprep.subr.mxu0 0.0
        %1950 = vmatpush1.msra.mxu0 0.0
        %1951 = vmatprep.subr.mxu0 0.0
        %1952 = vmatpush1.msra.mxu0 0.0
        %1953 = vmatprep.subr.mxu0 0.0
        %1954 = vmatpush1.msra.mxu0 0.0
        %1955 = vmatprep.subr.mxu0 0.0
        %1956 = vmatpush1.msra.mxu0 0.0
        %1957 = vmatprep.subr.mxu0 0.0
        %1958 = vmatpush1.msra.mxu0 %v1920
        %1959 = vmatprep.subr.mxu0 0.0
        %1960 = vmatpush1.msra.mxu0 %v1919
        %1961 = vmatprep.subr.mxu0 0.0
        %1962 = vmatpush1.msra.mxu0 %v1918
        %1963 = vmatprep.subr.mxu0 0.0
        %1964 = vmatpush1.msra.mxu0 %v1917
        %1965 = vmatprep.subr.mxu0 0.0
        %1966 = vmatpush2.msra.mxu0 0.0
        %1967 = vmatprep.subr.mxu0 0.0
        %1968 = vmatpush2.msra.mxu0 0.0
        %1969 = vmatprep.subr.mxu0 0.0
        %1970 = vmatpush2.msra.mxu0 0.0
        %1971 = vmatprep.subr.mxu0 0.0
        %1972 = vmatpush2.msra.mxu0 0.0
        %1973 = vmatprep.subr.mxu0 0.0
        %1974 = vmatpush2.msra.mxu0 0.0
        %1975 = vmatprep.subr.mxu0 0.0
        %1976 = vmatpush2.msra.mxu0 0.0
        %1977 = vmatprep.subr.mxu0 0.0
        %1978 = vmatpush2.msra.mxu0 0.0
        %1979 = vmatprep.subr.mxu0 0.0
        %1980 = vmatpush2.msra.mxu0 0.0
        %1981 = vmatprep.subr.mxu0 0.0
        %1982 = vmatpush2.msra.mxu0 0.0
        %1983 = vmatprep.subr.mxu0 0.0
        %1984 = vmatpush2.msra.mxu0 0.0
        %1985 = vmatprep.subr.mxu0 0.0
        %1986 = vmatpush2.msra.mxu0 0.0
        %1987 = vmatprep.subr.mxu0 0.0
        %1988 = vmatpush2.msra.mxu0 0.0
        %1989 = vmatprep.subr.mxu0 0.0
        %1990 = vmatpush2.msra.mxu0 0.0
        %1991 = vmatprep.subr.mxu0 0.0
        %1992 = vmatpush2.msra.mxu0 0.0
        %1993 = vmatprep.subr.mxu0 0.0
        %1994 = vmatpush2.msra.mxu0 0.0
        %1995 = vmatprep.subr.mxu0 0.0
        %1996 = vmatpush2.msra.mxu0 0.0
        %1997 = vmatprep.mubr.f32.mxu0 0.0
        %1998 = vmatmul.mubr.f32.gmra.mxu0 %v1922
        %v1999 = vpop.f32.mrf.mxu0
        %v2000 = vadd.f32 0.0, %v1999
        %v2001 = vpop.f32.mrf.mxu0
        %2002 = vmatprep.mubr.f32.mxu0 0.0
        %2003 = vmatmul.mubr.f32.gmra.mxu0 %v1925
        %v2004 = vpop.f32.mrf.mxu0
        %v2005 = vadd.f32 0.0, %v2004
        %v2006 = vpop.f32.mrf.mxu0
        %2007 = vmatprep.mubr.f32.mxu0 0.0
        %2008 = vmatmul.mubr.f32.gmra.mxu0 %v1928
        %v2009 = vpop.f32.mrf.mxu0
        %v2010 = vadd.f32 0.0, %v2009
        %v2011 = vpop.f32.mrf.mxu0
        %2012 = vmatprep.mubr.f32.mxu0 0.0
        %2013 = vmatmul.mubr.f32.gmra.mxu0 %v1931
        %v2014 = vpop.f32.mrf.mxu0
        %v2015 = vadd.f32 0.0, %v2014
        %v2016 = vpop.f32.mrf.mxu0
        %2017 = vdwg.mxu0
        %v2018 = vld [vmem:[#allocation18] sm:$0xff]
        %v2019 = vld [vmem:[#allocation18 + $0x8] sm:$0xff]
        %v2020 = vld [vmem:[#allocation18 + $0x10] sm:$0xff]
        %v2021 = vld [vmem:[#allocation18 + $0x18] sm:$0xff]
        %v2023 = vsel %vm680, %v1899, 0
        %v2026 = vsel %vm680, %v1904, 0
        %v2029 = vsel %vm680, %v1909, 0
        %v2032 = vsel %vm680, %v1914, 0
        %2034 = vmatprep.subr.mxu0 0.0
        %2035 = vmatpush1.msra.mxu0 0.0
        %2036 = vmatprep.subr.mxu0 0.0
        %2037 = vmatpush1.msra.mxu0 0.0
        %2038 = vmatprep.subr.mxu0 0.0
        %2039 = vmatpush1.msra.mxu0 0.0
        %2040 = vmatprep.subr.mxu0 0.0
        %2041 = vmatpush1.msra.mxu0 0.0
        %2042 = vmatprep.subr.mxu0 0.0
        %2043 = vmatpush1.msra.mxu0 0.0
        %2044 = vmatprep.subr.mxu0 0.0
        %2045 = vmatpush1.msra.mxu0 0.0
        %2046 = vmatprep.subr.mxu0 0.0
        %2047 = vmatpush1.msra.mxu0 0.0
        %2048 = vmatprep.subr.mxu0 0.0
        %2049 = vmatpush1.msra.mxu0 0.0
        %2050 = vmatprep.subr.mxu0 0.0
        %2051 = vmatpush1.msra.mxu0 0.0
        %2052 = vmatprep.subr.mxu0 0.0
        %2053 = vmatpush1.msra.mxu0 0.0
        %2054 = vmatprep.subr.mxu0 0.0
        %2055 = vmatpush1.msra.mxu0 0.0
        %2056 = vmatprep.subr.mxu0 0.0
        %2057 = vmatpush1.msra.mxu0 0.0
        %2058 = vmatprep.subr.mxu0 0.0
        %2059 = vmatpush1.msra.mxu0 %v2021
        %2060 = vmatprep.subr.mxu0 0.0
        %2061 = vmatpush1.msra.mxu0 %v2020
        %2062 = vmatprep.subr.mxu0 0.0
        %2063 = vmatpush1.msra.mxu0 %v2019
        %2064 = vmatprep.subr.mxu0 0.0
        %2065 = vmatpush1.msra.mxu0 %v2018
        %2066 = vmatprep.subr.mxu0 0.0
        %2067 = vmatpush2.msra.mxu0 0.0
        %2068 = vmatprep.subr.mxu0 0.0
        %2069 = vmatpush2.msra.mxu0 0.0
        %2070 = vmatprep.subr.mxu0 0.0
        %2071 = vmatpush2.msra.mxu0 0.0
        %2072 = vmatprep.subr.mxu0 0.0
        %2073 = vmatpush2.msra.mxu0 0.0
        %2074 = vmatprep.subr.mxu0 0.0
        %2075 = vmatpush2.msra.mxu0 0.0
        %2076 = vmatprep.subr.mxu0 0.0
        %2077 = vmatpush2.msra.mxu0 0.0
        %2078 = vmatprep.subr.mxu0 0.0
        %2079 = vmatpush2.msra.mxu0 0.0
        %2080 = vmatprep.subr.mxu0 0.0
        %2081 = vmatpush2.msra.mxu0 0.0
        %2082 = vmatprep.subr.mxu0 0.0
        %2083 = vmatpush2.msra.mxu0 0.0
        %2084 = vmatprep.subr.mxu0 0.0
        %2085 = vmatpush2.msra.mxu0 0.0
        %2086 = vmatprep.subr.mxu0 0.0
        %2087 = vmatpush2.msra.mxu0 0.0
        %2088 = vmatprep.subr.mxu0 0.0
        %2089 = vmatpush2.msra.mxu0 0.0
        %2090 = vmatprep.subr.mxu0 0.0
        %2091 = vmatpush2.msra.mxu0 0.0
        %2092 = vmatprep.subr.mxu0 0.0
        %2093 = vmatpush2.msra.mxu0 0.0
        %2094 = vmatprep.subr.mxu0 0.0
        %2095 = vmatpush2.msra.mxu0 0.0
        %2096 = vmatprep.subr.mxu0 0.0
        %2097 = vmatpush2.msra.mxu0 0.0
        %2098 = vmatprep.mubr.f32.mxu0 0.0
        %2099 = vmatmul.mubr.f32.gmra.mxu0 %v2023
        %v2100 = vpop.f32.mrf.mxu0
        %v2101 = vadd.f32 0.0, %v2100
        %v2102 = vpop.f32.mrf.mxu0
        %2103 = vmatprep.mubr.f32.mxu0 0.0
        %2104 = vmatmul.mubr.f32.gmra.mxu0 %v2026
        %v2105 = vpop.f32.mrf.mxu0
        %v2106 = vadd.f32 0.0, %v2105
        %v2107 = vpop.f32.mrf.mxu0
        %2108 = vmatprep.mubr.f32.mxu0 0.0
        %2109 = vmatmul.mubr.f32.gmra.mxu0 %v2029
        %v2110 = vpop.f32.mrf.mxu0
        %v2111 = vadd.f32 0.0, %v2110
        %v2112 = vpop.f32.mrf.mxu0
        %2113 = vmatprep.mubr.f32.mxu0 0.0
        %2114 = vmatmul.mubr.f32.gmra.mxu0 %v2032
        %v2115 = vpop.f32.mrf.mxu0
        %v2116 = vadd.f32 0.0, %v2115
        %v2117 = vpop.f32.mrf.mxu0
        %2118 = vdwg.mxu0
        %v2119 = vsub.f32 %v2000, %v2101
        %v2120 = vsub.f32 %v2005, %v2106
        %v2121 = vsub.f32 %v2010, %v2111
        %v2122 = vsub.f32 %v2015, %v2116
        %2123 = vmatprep.subr.mxu0 0.0
        %2124 = vmatpush1.msra.mxu0 0.0
        %2125 = vmatprep.subr.mxu0 0.0
        %2126 = vmatpush1.msra.mxu0 0.0
        %2127 = vmatprep.subr.mxu0 0.0
        %2128 = vmatpush1.msra.mxu0 0.0
        %2129 = vmatprep.subr.mxu0 0.0
        %2130 = vmatpush1.msra.mxu0 0.0
        %2131 = vmatprep.subr.mxu0 0.0
        %2132 = vmatpush1.msra.mxu0 0.0
        %2133 = vmatprep.subr.mxu0 0.0
        %2134 = vmatpush1.msra.mxu0 0.0
        %2135 = vmatprep.subr.mxu0 0.0
        %2136 = vmatpush1.msra.mxu0 0.0
        %2137 = vmatprep.subr.mxu0 0.0
        %2138 = vmatpush1.msra.mxu0 0.0
        %2139 = vmatprep.subr.mxu0 0.0
        %2140 = vmatpush1.msra.mxu0 0.0
        %2141 = vmatprep.subr.mxu0 0.0
        %2142 = vmatpush1.msra.mxu0 0.0
        %2143 = vmatprep.subr.mxu0 0.0
        %2144 = vmatpush1.msra.mxu0 0.0
        %2145 = vmatprep.subr.mxu0 0.0
        %2146 = vmatpush1.msra.mxu0 0.0
        %2147 = vmatprep.subr.mxu0 0.0
        %2148 = vmatpush1.msra.mxu0 %v1920
        %2149 = vmatprep.subr.mxu0 0.0
        %2150 = vmatpush1.msra.mxu0 %v1919
        %2151 = vmatprep.subr.mxu0 0.0
        %2152 = vmatpush1.msra.mxu0 %v1918
        %2153 = vmatprep.subr.mxu0 0.0
        %2154 = vmatpush1.msra.mxu0 %v1917
        %2155 = vmatprep.subr.mxu0 0.0
        %2156 = vmatpush2.msra.mxu0 0.0
        %2157 = vmatprep.subr.mxu0 0.0
        %2158 = vmatpush2.msra.mxu0 0.0
        %2159 = vmatprep.subr.mxu0 0.0
        %2160 = vmatpush2.msra.mxu0 0.0
        %2161 = vmatprep.subr.mxu0 0.0
        %2162 = vmatpush2.msra.mxu0 0.0
        %2163 = vmatprep.subr.mxu0 0.0
        %2164 = vmatpush2.msra.mxu0 0.0
        %2165 = vmatprep.subr.mxu0 0.0
        %2166 = vmatpush2.msra.mxu0 0.0
        %2167 = vmatprep.subr.mxu0 0.0
        %2168 = vmatpush2.msra.mxu0 0.0
        %2169 = vmatprep.subr.mxu0 0.0
        %2170 = vmatpush2.msra.mxu0 0.0
        %2171 = vmatprep.subr.mxu0 0.0
        %2172 = vmatpush2.msra.mxu0 0.0
        %2173 = vmatprep.subr.mxu0 0.0
        %2174 = vmatpush2.msra.mxu0 0.0
        %2175 = vmatprep.subr.mxu0 0.0
        %2176 = vmatpush2.msra.mxu0 0.0
        %2177 = vmatprep.subr.mxu0 0.0
        %2178 = vmatpush2.msra.mxu0 0.0
        %2179 = vmatprep.subr.mxu0 0.0
        %2180 = vmatpush2.msra.mxu0 0.0
        %2181 = vmatprep.subr.mxu0 0.0
        %2182 = vmatpush2.msra.mxu0 0.0
        %2183 = vmatprep.subr.mxu0 0.0
        %2184 = vmatpush2.msra.mxu0 0.0
        %2185 = vmatprep.subr.mxu0 0.0
        %2186 = vmatpush2.msra.mxu0 0.0
        %2187 = vmatprep.mubr.f32.mxu0 0.0
        %2188 = vmatmul.mubr.f32.gmra.mxu0 %v2023
        %v2189 = vpop.f32.mrf.mxu0
        %v2190 = vadd.f32 0.0, %v2189
        %v2191 = vpop.f32.mrf.mxu0
        %2192 = vmatprep.mubr.f32.mxu0 0.0
        %2193 = vmatmul.mubr.f32.gmra.mxu0 %v2026
        %v2194 = vpop.f32.mrf.mxu0
        %v2195 = vadd.f32 0.0, %v2194
        %v2196 = vpop.f32.mrf.mxu0
        %2197 = vmatprep.mubr.f32.mxu0 0.0
        %2198 = vmatmul.mubr.f32.gmra.mxu0 %v2029
        %v2199 = vpop.f32.mrf.mxu0
        %v2200 = vadd.f32 0.0, %v2199
        %v2201 = vpop.f32.mrf.mxu0
        %2202 = vmatprep.mubr.f32.mxu0 0.0
        %2203 = vmatmul.mubr.f32.gmra.mxu0 %v2032
        %v2204 = vpop.f32.mrf.mxu0
        %v2205 = vadd.f32 0.0, %v2204
        %v2206 = vpop.f32.mrf.mxu0
        %2207 = vdwg.mxu0
        %2208 = vmatprep.subr.mxu0 0.0
        %2209 = vmatpush1.msra.mxu0 0.0
        %2210 = vmatprep.subr.mxu0 0.0
        %2211 = vmatpush1.msra.mxu0 0.0
        %2212 = vmatprep.subr.mxu0 0.0
        %2213 = vmatpush1.msra.mxu0 0.0
        %2214 = vmatprep.subr.mxu0 0.0
        %2215 = vmatpush1.msra.mxu0 0.0
        %2216 = vmatprep.subr.mxu0 0.0
        %2217 = vmatpush1.msra.mxu0 0.0
        %2218 = vmatprep.subr.mxu0 0.0
        %2219 = vmatpush1.msra.mxu0 0.0
        %2220 = vmatprep.subr.mxu0 0.0
        %2221 = vmatpush1.msra.mxu0 0.0
        %2222 = vmatprep.subr.mxu0 0.0
        %2223 = vmatpush1.msra.mxu0 0.0
        %2224 = vmatprep.subr.mxu0 0.0
        %2225 = vmatpush1.msra.mxu0 0.0
        %2226 = vmatprep.subr.mxu0 0.0
        %2227 = vmatpush1.msra.mxu0 0.0
        %2228 = vmatprep.subr.mxu0 0.0
        %2229 = vmatpush1.msra.mxu0 0.0
        %2230 = vmatprep.subr.mxu0 0.0
        %2231 = vmatpush1.msra.mxu0 0.0
        %2232 = vmatprep.subr.mxu0 0.0
        %2233 = vmatpush1.msra.mxu0 %v2021
        %2234 = vmatprep.subr.mxu0 0.0
        %2235 = vmatpush1.msra.mxu0 %v2020
        %2236 = vmatprep.subr.mxu0 0.0
        %2237 = vmatpush1.msra.mxu0 %v2019
        %2238 = vmatprep.subr.mxu0 0.0
        %2239 = vmatpush1.msra.mxu0 %v2018
        %2240 = vmatprep.subr.mxu0 0.0
        %2241 = vmatpush2.msra.mxu0 0.0
        %2242 = vmatprep.subr.mxu0 0.0
        %2243 = vmatpush2.msra.mxu0 0.0
        %2244 = vmatprep.subr.mxu0 0.0
        %2245 = vmatpush2.msra.mxu0 0.0
        %2246 = vmatprep.subr.mxu0 0.0
        %2247 = vmatpush2.msra.mxu0 0.0
        %2248 = vmatprep.subr.mxu0 0.0
        %2249 = vmatpush2.msra.mxu0 0.0
        %2250 = vmatprep.subr.mxu0 0.0
        %2251 = vmatpush2.msra.mxu0 0.0
        %2252 = vmatprep.subr.mxu0 0.0
        %2253 = vmatpush2.msra.mxu0 0.0
        %2254 = vmatprep.subr.mxu0 0.0
        %2255 = vmatpush2.msra.mxu0 0.0
        %2256 = vmatprep.subr.mxu0 0.0
        %2257 = vmatpush2.msra.mxu0 0.0
        %2258 = vmatprep.subr.mxu0 0.0
        %2259 = vmatpush2.msra.mxu0 0.0
        %2260 = vmatprep.subr.mxu0 0.0
        %2261 = vmatpush2.msra.mxu0 0.0
        %2262 = vmatprep.subr.mxu0 0.0
        %2263 = vmatpush2.msra.mxu0 0.0
        %2264 = vmatprep.subr.mxu0 0.0
        %2265 = vmatpush2.msra.mxu0 0.0
        %2266 = vmatprep.subr.mxu0 0.0
        %2267 = vmatpush2.msra.mxu0 0.0
        %2268 = vmatprep.subr.mxu0 0.0
        %2269 = vmatpush2.msra.mxu0 0.0
        %2270 = vmatprep.subr.mxu0 0.0
        %2271 = vmatpush2.msra.mxu0 0.0
        %2272 = vmatprep.mubr.f32.mxu0 0.0
        %2273 = vmatmul.mubr.f32.gmra.mxu0 %v1922
        %v2274 = vpop.f32.mrf.mxu0
        %v2275 = vadd.f32 %v2190, %v2274
        %v2276 = vpop.f32.mrf.mxu0
        %2277 = vmatprep.mubr.f32.mxu0 0.0
        %2278 = vmatmul.mubr.f32.gmra.mxu0 %v1925
        %v2279 = vpop.f32.mrf.mxu0
        %v2280 = vadd.f32 %v2195, %v2279
        %v2281 = vpop.f32.mrf.mxu0
        %2282 = vmatprep.mubr.f32.mxu0 0.0
        %2283 = vmatmul.mubr.f32.gmra.mxu0 %v1928
        %v2284 = vpop.f32.mrf.mxu0
        %v2285 = vadd.f32 %v2200, %v2284
        %v2286 = vpop.f32.mrf.mxu0
        %2287 = vmatprep.mubr.f32.mxu0 0.0
        %2288 = vmatmul.mubr.f32.gmra.mxu0 %v1931
        %v2289 = vpop.f32.mrf.mxu0
        %v2290 = vadd.f32 %v2205, %v2289
        %v2291 = vpop.f32.mrf.mxu0
        %2292 = vdwg.mxu0
        %v2293 = vmul.f32 %v2119, %v2119
        %v2294 = vmul.f32 %v2120, %v2120
        %v2295 = vmul.f32 %v2121, %v2121
        %v2296 = vmul.f32 %v2122, %v2122
        %v2297 = vmul.f32 %v2275, %v2275
        %v2298 = vmul.f32 %v2280, %v2280
        %v2299 = vmul.f32 %v2285, %v2285
        %v2300 = vmul.f32 %v2290, %v2290
        %v2301 = vadd.f32 %v2293, %v2297
        %v2302 = vadd.f32 %v2294, %v2298
        %v2303 = vadd.f32 %v2295, %v2299
        %v2304 = vadd.f32 %v2296, %v2300
        %v2305 = vrsqrt.pop %v2301
        %v2306 = vmul.f32 %v2301, %v2305
        %vm2307 = vcmp.eq.f32.partialorder %v2301, inf
        %v2308 = vsel %vm2307, %v2301, %v2306
        %vm2309 = vcmp.eq.f32.partialorder %v2301, 0.0
        %v2310 = vand.u32 %v2301, 2147483648
        %v2311 = vsel %vm2309, %v2310, %v2308
        %v2312 = vrsqrt.pop %v2302
        %v2313 = vmul.f32 %v2302, %v2312
        %vm2314 = vcmp.eq.f32.partialorder %v2302, inf
        %v2315 = vsel %vm2314, %v2302, %v2313
        %vm2316 = vcmp.eq.f32.partialorder %v2302, 0.0
        %v2317 = vand.u32 %v2302, 2147483648
        %v2318 = vsel %vm2316, %v2317, %v2315
        %v2319 = vrsqrt.pop %v2303
        %v2320 = vmul.f32 %v2303, %v2319
        %vm2321 = vcmp.eq.f32.partialorder %v2303, inf
        %v2322 = vsel %vm2321, %v2303, %v2320
        %vm2323 = vcmp.eq.f32.partialorder %v2303, 0.0
        %v2324 = vand.u32 %v2303, 2147483648
        %v2325 = vsel %vm2323, %v2324, %v2322
        %v2326 = vrsqrt.pop %v2304
        %v2327 = vmul.f32 %v2304, %v2326
        %vm2328 = vcmp.eq.f32.partialorder %v2304, inf
        %v2329 = vsel %vm2328, %v2304, %v2327
        %vm2330 = vcmp.eq.f32.partialorder %v2304, 0.0
        %v2331 = vand.u32 %v2304, 2147483648
        %v2332 = vsel %vm2330, %v2331, %v2329
        %v2333 = vld [vmem:[#allocation22] sm:$0xff]
        %v2334 = vld [vmem:[#allocation22 + $0x8] sm:$0xff]
        %v2335 = vld [vmem:[#allocation22 + $0x10] sm:$0xff]
        %v2336 = vld [vmem:[#allocation22 + $0x18] sm:$0xff]
        %v2338 = vsel %vm680, %v2333, 0
        %v2341 = vsel %vm680, %v2334, 0
        %v2344 = vsel %vm680, %v2335, 0
        %v2347 = vsel %vm680, %v2336, 0
        %2349 = vmatprep.subr.mxu0 0.0
        %2350 = vmatpush1.msra.mxu0 0.0
        %2351 = vmatprep.subr.mxu0 0.0
        %2352 = vmatpush1.msra.mxu0 0.0
        %2353 = vmatprep.subr.mxu0 0.0
        %2354 = vmatpush1.msra.mxu0 0.0
        %2355 = vmatprep.subr.mxu0 0.0
        %2356 = vmatpush1.msra.mxu0 0.0
        %2357 = vmatprep.subr.mxu0 0.0
        %2358 = vmatpush1.msra.mxu0 0.0
        %2359 = vmatprep.subr.mxu0 0.0
        %2360 = vmatpush1.msra.mxu0 0.0
        %2361 = vmatprep.subr.mxu0 0.0
        %2362 = vmatpush1.msra.mxu0 0.0
        %2363 = vmatprep.subr.mxu0 0.0
        %2364 = vmatpush1.msra.mxu0 0.0
        %2365 = vmatprep.subr.mxu0 0.0
        %2366 = vmatpush1.msra.mxu0 0.0
        %2367 = vmatprep.subr.mxu0 0.0
        %2368 = vmatpush1.msra.mxu0 0.0
        %2369 = vmatprep.subr.mxu0 0.0
        %2370 = vmatpush1.msra.mxu0 0.0
        %2371 = vmatprep.subr.mxu0 0.0
        %2372 = vmatpush1.msra.mxu0 0.0
        %2373 = vmatprep.subr.mxu0 0.0
        %2374 = vmatpush1.msra.mxu0 %v2332
        %2375 = vmatprep.subr.mxu0 0.0
        %2376 = vmatpush1.msra.mxu0 %v2325
        %2377 = vmatprep.subr.mxu0 0.0
        %2378 = vmatpush1.msra.mxu0 %v2318
        %2379 = vmatprep.subr.mxu0 0.0
        %2380 = vmatpush1.msra.mxu0 %v2311
        %2381 = vmatprep.subr.mxu0 0.0
        %2382 = vmatpush2.msra.mxu0 0.0
        %2383 = vmatprep.subr.mxu0 0.0
        %2384 = vmatpush2.msra.mxu0 0.0
        %2385 = vmatprep.subr.mxu0 0.0
        %2386 = vmatpush2.msra.mxu0 0.0
        %2387 = vmatprep.subr.mxu0 0.0
        %2388 = vmatpush2.msra.mxu0 0.0
        %2389 = vmatprep.subr.mxu0 0.0
        %2390 = vmatpush2.msra.mxu0 0.0
        %2391 = vmatprep.subr.mxu0 0.0
        %2392 = vmatpush2.msra.mxu0 0.0
        %2393 = vmatprep.subr.mxu0 0.0
        %2394 = vmatpush2.msra.mxu0 0.0
        %2395 = vmatprep.subr.mxu0 0.0
        %2396 = vmatpush2.msra.mxu0 0.0
        %2397 = vmatprep.subr.mxu0 0.0
        %2398 = vmatpush2.msra.mxu0 0.0
        %2399 = vmatprep.subr.mxu0 0.0
        %2400 = vmatpush2.msra.mxu0 0.0
        %2401 = vmatprep.subr.mxu0 0.0
        %2402 = vmatpush2.msra.mxu0 0.0
        %2403 = vmatprep.subr.mxu0 0.0
        %2404 = vmatpush2.msra.mxu0 0.0
        %2405 = vmatprep.subr.mxu0 0.0
        %2406 = vmatpush2.msra.mxu0 0.0
        %2407 = vmatprep.subr.mxu0 0.0
        %2408 = vmatpush2.msra.mxu0 0.0
        %2409 = vmatprep.subr.mxu0 0.0
        %2410 = vmatpush2.msra.mxu0 0.0
        %2411 = vmatprep.subr.mxu0 0.0
        %2412 = vmatpush2.msra.mxu0 0.0
        %2413 = vmatprep.mubr.f32.mxu0 0.0
        %2414 = vmatmul.mubr.f32.gmra.mxu0 %v2338
        %v2415 = vpop.f32.mrf.mxu0
        %v2416 = vadd.f32 0.0, %v2415
        %v2417 = vpop.f32.mrf.mxu0
        %2418 = vmatprep.mubr.f32.mxu0 0.0
        %2419 = vmatmul.mubr.f32.gmra.mxu0 %v2341
        %v2420 = vpop.f32.mrf.mxu0
        %v2421 = vadd.f32 0.0, %v2420
        %v2422 = vpop.f32.mrf.mxu0
        %2423 = vmatprep.mubr.f32.mxu0 0.0
        %2424 = vmatmul.mubr.f32.gmra.mxu0 %v2344
        %v2425 = vpop.f32.mrf.mxu0
        %v2426 = vadd.f32 0.0, %v2425
        %v2427 = vpop.f32.mrf.mxu0
        %2428 = vmatprep.mubr.f32.mxu0 0.0
        %2429 = vmatmul.mubr.f32.gmra.mxu0 %v2347
        %v2430 = vpop.f32.mrf.mxu0
        %v2431 = vadd.f32 0.0, %v2430
        %v2432 = vpop.f32.mrf.mxu0
        %2433 = vdwg.mxu0
        %v2434 = vld [vmem:[#allocation24] sm:$0xff]
        %v2435 = vld [vmem:[#allocation24 + $0x8] sm:$0xff]
        %v2436 = vld [vmem:[#allocation24 + $0x10] sm:$0xff]
        %v2437 = vld [vmem:[#allocation24 + $0x18] sm:$0xff]
        %v2439 = vsel %vm680, %v2416, 0
        %v2442 = vsel %vm680, %v2421, 0
        %v2445 = vsel %vm680, %v2426, 0
        %v2448 = vsel %vm680, %v2431, 0
        %2450 = vmatprep.subr.mxu0 0.0
        %2451 = vmatpush1.msra.mxu0 0.0
        %2452 = vmatprep.subr.mxu0 0.0
        %2453 = vmatpush1.msra.mxu0 0.0
        %2454 = vmatprep.subr.mxu0 0.0
        %2455 = vmatpush1.msra.mxu0 0.0
        %2456 = vmatprep.subr.mxu0 0.0
        %2457 = vmatpush1.msra.mxu0 0.0
        %2458 = vmatprep.subr.mxu0 0.0
        %2459 = vmatpush1.msra.mxu0 0.0
        %2460 = vmatprep.subr.mxu0 0.0
        %2461 = vmatpush1.msra.mxu0 0.0
        %2462 = vmatprep.subr.mxu0 0.0
        %2463 = vmatpush1.msra.mxu0 0.0
        %2464 = vmatprep.subr.mxu0 0.0
        %2465 = vmatpush1.msra.mxu0 0.0
        %2466 = vmatprep.subr.mxu0 0.0
        %2467 = vmatpush1.msra.mxu0 0.0
        %2468 = vmatprep.subr.mxu0 0.0
        %2469 = vmatpush1.msra.mxu0 0.0
        %2470 = vmatprep.subr.mxu0 0.0
        %2471 = vmatpush1.msra.mxu0 0.0
        %2472 = vmatprep.subr.mxu0 0.0
        %2473 = vmatpush1.msra.mxu0 0.0
        %2474 = vmatprep.subr.mxu0 0.0
        %2475 = vmatpush1.msra.mxu0 %v2437
        %2476 = vmatprep.subr.mxu0 0.0
        %2477 = vmatpush1.msra.mxu0 %v2436
        %2478 = vmatprep.subr.mxu0 0.0
        %2479 = vmatpush1.msra.mxu0 %v2435
        %2480 = vmatprep.subr.mxu0 0.0
        %2481 = vmatpush1.msra.mxu0 %v2434
        %2482 = vmatprep.subr.mxu0 0.0
        %2483 = vmatpush2.msra.mxu0 0.0
        %2484 = vmatprep.subr.mxu0 0.0
        %2485 = vmatpush2.msra.mxu0 0.0
        %2486 = vmatprep.subr.mxu0 0.0
        %2487 = vmatpush2.msra.mxu0 0.0
        %2488 = vmatprep.subr.mxu0 0.0
        %2489 = vmatpush2.msra.mxu0 0.0
        %2490 = vmatprep.subr.mxu0 0.0
        %2491 = vmatpush2.msra.mxu0 0.0
        %2492 = vmatprep.subr.mxu0 0.0
        %2493 = vmatpush2.msra.mxu0 0.0
        %2494 = vmatprep.subr.mxu0 0.0
        %2495 = vmatpush2.msra.mxu0 0.0
        %2496 = vmatprep.subr.mxu0 0.0
        %2497 = vmatpush2.msra.mxu0 0.0
        %2498 = vmatprep.subr.mxu0 0.0
        %2499 = vmatpush2.msra.mxu0 0.0
        %2500 = vmatprep.subr.mxu0 0.0
        %2501 = vmatpush2.msra.mxu0 0.0
        %2502 = vmatprep.subr.mxu0 0.0
        %2503 = vmatpush2.msra.mxu0 0.0
        %2504 = vmatprep.subr.mxu0 0.0
        %2505 = vmatpush2.msra.mxu0 0.0
        %2506 = vmatprep.subr.mxu0 0.0
        %2507 = vmatpush2.msra.mxu0 0.0
        %2508 = vmatprep.subr.mxu0 0.0
        %2509 = vmatpush2.msra.mxu0 0.0
        %2510 = vmatprep.subr.mxu0 0.0
        %2511 = vmatpush2.msra.mxu0 0.0
        %2512 = vmatprep.subr.mxu0 0.0
        %2513 = vmatpush2.msra.mxu0 0.0
        %2514 = vmatprep.mubr.f32.mxu0 0.0
        %2515 = vmatmul.mubr.f32.gmra.mxu0 %v2439
        %v2516 = vpop.f32.mrf.mxu0
        %v2517 = vadd.f32 0.0, %v2516
        %v2518 = vpop.f32.mrf.mxu0
        %2519 = vmatprep.mubr.f32.mxu0 0.0
        %2520 = vmatmul.mubr.f32.gmra.mxu0 %v2442
        %v2521 = vpop.f32.mrf.mxu0
        %v2522 = vadd.f32 0.0, %v2521
        %v2523 = vpop.f32.mrf.mxu0
        %2524 = vmatprep.mubr.f32.mxu0 0.0
        %2525 = vmatmul.mubr.f32.gmra.mxu0 %v2445
        %v2526 = vpop.f32.mrf.mxu0
        %v2527 = vadd.f32 0.0, %v2526
        %v2528 = vpop.f32.mrf.mxu0
        %2529 = vmatprep.mubr.f32.mxu0 0.0
        %2530 = vmatmul.mubr.f32.gmra.mxu0 %v2448
        %v2531 = vpop.f32.mrf.mxu0
        %v2532 = vadd.f32 0.0, %v2531
        %v2533 = vpop.f32.mrf.mxu0
        %2534 = vdwg.mxu0
        %s2535 = sld [smem:[#allocation2]]
        %v2536 = vstv %s2535
        %v2537 = vmul.f32 %v2536, %v2517
        %v2538 = vmul.f32 %v2536, %v2522
        %v2539 = vmul.f32 %v2536, %v2527
        %v2540 = vmul.f32 %v2536, %v2532
        %s2541 = sld [smem:[#allocation2 + $0x1]]
        %v2542 = vstv %s2541
        %v2543 = vmul.f32 %v2542, %v672
        %v2544 = vmul.f32 %v2542, %v673
        %v2545 = vmul.f32 %v2542, %v674
        %v2546 = vmul.f32 %v2542, %v675
        %v2547 = vadd.f32 %v2537, %v2543
        %v2548 = vadd.f32 %v2538, %v2544
        %v2549 = vadd.f32 %v2539, %v2545
        %v2550 = vadd.f32 %v2540, %v2546
        %s2551 = sld [smem:[#allocation2 + $0x2]]
        %v2552 = vstv %s2551
        %v2553 = vadd.f32 %v2547, %v2552
        %v2554 = vadd.f32 %v2548, %v2552
        %v2555 = vadd.f32 %v2549, %v2552
        %v2556 = vadd.f32 %v2550, %v2552
        %v2557 = vmax.f32 %v2553, 0.0
        %v2558 = vmax.f32 %v2554, 0.0
        %v2559 = vmax.f32 %v2555, 0.0
        %v2560 = vmax.f32 %v2556, 0.0
        %2561 = vst.msk [vmem:[%s671] sm:$0xff] %vm680, %v2557
        %2562 = vst.msk [vmem:[%s671 + $0x8] sm:$0xff] %vm680, %v2558
        %2563 = vst.msk [vmem:[%s671 + $0x10] sm:$0xff] %vm680, %v2559
        %2564 = vst.msk [vmem:[%s671 + $0x18] sm:$0xff] %vm680, %v2560
        %s2565 = sld [smem:[#allocation2 + $0x80]]
        %v2566 = vstv %s2565
        %v2567 = vmul.f32 %v2566, %v2517
        %v2568 = vmul.f32 %v2566, %v2522
        %v2569 = vmul.f32 %v2566, %v2527
        %v2570 = vmul.f32 %v2566, %v2532
        %s2571 = sld [smem:[#allocation2 + $0x81]]
        %v2572 = vstv %s2571
        %v2573 = vmul.f32 %v2572, %v672
        %v2574 = vmul.f32 %v2572, %v673
        %v2575 = vmul.f32 %v2572, %v674
        %v2576 = vmul.f32 %v2572, %v675
        %v2577 = vadd.f32 %v2567, %v2573
        %v2578 = vadd.f32 %v2568, %v2574
        %v2579 = vadd.f32 %v2569, %v2575
        %v2580 = vadd.f32 %v2570, %v2576
        %s2581 = sld [smem:[#allocation2 + $0x82]]
        %v2582 = vstv %s2581
        %v2583 = vadd.f32 %v2577, %v2582
        %v2584 = vadd.f32 %v2578, %v2582
        %v2585 = vadd.f32 %v2579, %v2582
        %v2586 = vadd.f32 %v2580, %v2582
        %v2587 = vmax.f32 %v2583, 0.0
        %v2588 = vmax.f32 %v2584, 0.0
        %v2589 = vmax.f32 %v2585, 0.0
        %v2590 = vmax.f32 %v2586, 0.0
        %s2591 = scalar_lea.vmem %s671, 32 [#allocation25]
        %2592 = vst.msk [vmem:[%s2591] sm:$0xff] %vm680, %v2587
        %2593 = vst.msk [vmem:[%s2591 + $0x8] sm:$0xff] %vm680, %v2588
        %2594 = vst.msk [vmem:[%s2591 + $0x10] sm:$0xff] %vm680, %v2589
        %2595 = vst.msk [vmem:[%s2591 + $0x18] sm:$0xff] %vm680, %v2590
        %s2596 = sld [smem:[#allocation2 + $0x100]]
        %v2597 = vstv %s2596
        %v2598 = vmul.f32 %v2597, %v2517
        %v2599 = vmul.f32 %v2597, %v2522
        %v2600 = vmul.f32 %v2597, %v2527
        %v2601 = vmul.f32 %v2597, %v2532
        %s2602 = sld [smem:[#allocation2 + $0x101]]
        %v2603 = vstv %s2602
        %v2604 = vmul.f32 %v2603, %v672
        %v2605 = vmul.f32 %v2603, %v673
        %v2606 = vmul.f32 %v2603, %v674
        %v2607 = vmul.f32 %v2603, %v675
        %v2608 = vadd.f32 %v2598, %v2604
        %v2609 = vadd.f32 %v2599, %v2605
        %v2610 = vadd.f32 %v2600, %v2606
        %v2611 = vadd.f32 %v2601, %v2607
        %s2612 = sld [smem:[#allocation2 + $0x102]]
        %v2613 = vstv %s2612
        %v2614 = vadd.f32 %v2608, %v2613
        %v2615 = vadd.f32 %v2609, %v2613
        %v2616 = vadd.f32 %v2610, %v2613
        %v2617 = vadd.f32 %v2611, %v2613
        %v2618 = vmax.f32 %v2614, 0.0
        %v2619 = vmax.f32 %v2615, 0.0
        %v2620 = vmax.f32 %v2616, 0.0
        %v2621 = vmax.f32 %v2617, 0.0
        %s2622 = scalar_lea.vmem %s671, 64 [#allocation25]
        %2623 = vst.msk [vmem:[%s2622] sm:$0xff] %vm680, %v2618
        %2624 = vst.msk [vmem:[%s2622 + $0x8] sm:$0xff] %vm680, %v2619
        %2625 = vst.msk [vmem:[%s2622 + $0x10] sm:$0xff] %vm680, %v2620
        %2626 = vst.msk [vmem:[%s2622 + $0x18] sm:$0xff] %vm680, %v2621
        %s2627 = sand.u32 %s345, 1
        %s2628 = scalar_lea.sflag [#allocation4], %s2627
        %s2629 = sand.u32 %s345, 1
        %s2630 = smul.addr %s2629, 96
        %s2631 = scalar_lea.vmem [#allocation25], %s2630
        // Predicated region
        $region133: #{tpu_custom_call.1} parent=75 // pred_check
          %p2632 = pneg %p355
        $region134: #{tpu_custom_call.1} parent=75 // pred_check_branch
          %2634 = sbr.rel (%p2632) target = $region136
        $region135: #{tpu_custom_call.1} parent=75 // pred_region
          %s2636 = ssub.s32 1536, 1536
          %2637 = vsyncadd %s2628, %s2636
          %s2638 = smul.addr %s38, 12
          %s2639 = smul.addr %s2638, 128
          %s2640 = scalar_lea.hbm %s14, %s2639
          %s2641 = sshll.u32 %s2631, 4
          %s2642 = int_to_ptr.vmem [resolvable:$true] %s2641
          %2647 = dma.vmem_to_hbm [thread:$0]  %s2642, 1536, %s2640, %s2628, 128, 128, 8
        $region136: #{tpu_custom_call.1} parent=75 // pred_fallthru
          _
      $region76: #{tpu_custom_call.1} parent=5 // pred_fallthru
        _
      %p2648 = scmp.le.s32.totalorder 2, %s33
      // Predicated region
      $region137: #{tpu_custom_call.1} parent=5 // pred_check
        %p2649 = pneg %p2648
      $region138: #{tpu_custom_call.1} parent=5 // pred_check_branch
        %2651 = sbr.rel (%p2649) target = $region140
      $region139: #{tpu_custom_call.1} parent=5 // pred_region
        %s2652 = ssub.s32 %s33, 2
        // Predicated region
        $region141: #{tpu_custom_call.1} parent=139 // pred_check
          %p2653 = pneg %p361
        $region142: #{tpu_custom_call.1} parent=139 // pred_check_branch
          %2655 = sbr.rel (%p2653) target = $region144
        $region143: #{tpu_custom_call.1} parent=139 // pred_region
          %s2656 = sand.u32 %s346, 1
          %s2657 = scalar_lea.sflag [#allocation4], %s2656
          %s2658 = sand.u32 %s346, 1
          %s2659 = smul.addr %s2658, 96
          %s2660 = scalar_lea.vmem [#allocation25], %s2659
          %2661 = dma.done %s2657, 1536
        $region144: #{tpu_custom_call.1} parent=139 // pred_fallthru
          _
      $region140: #{tpu_custom_call.1} parent=5 // pred_fallthru
        _
    $region6: #{tpu_custom_call.1} parent=1 // loop_footer
      %s37 = sadd.s32 1, %s33
    $region7: #{tpu_custom_call.1} parent=1 // loop_footer_branch
      %32 = sbr.rel target = $region3
    $region8: #{tpu_custom_call.1} parent=1 // loop_exit
      _
    %2662 = vsyncpa [#allocation3], 1
    %s2663 = scalar_lea.sflag [#allocation3], 1
    %2664 = vsyncpa %s2663, 1
    %2665 = vsyncpa [#allocation8], 1
    %2666 = vsyncpa [#allocation11], 1
    %2667 = vsyncpa [#allocation14], 1
    %2668 = vsyncpa [#allocation17], 1
    %2669 = vsyncpa [#allocation20], 1
    %2670 = vsyncpa [#allocation23], 1
    %2671 = vsyncpa [#allocation4], 1
    %s2672 = scalar_lea.sflag [#allocation4], 1
    %2673 = vsyncpa %s2672, 1
    %2674 = vsyncpa [#allocation5], 1
    %s2675 = scalar_lea.sflag [#allocation5], 1
    %2676 = vsyncpa %s2675, 1

</llo_original>
